<compile_context>
chip_gen: v6e
topology: v6e:2x2x1
jax: 0.10.0
libtpu: 0.0.40
codegen_flags: <defaults>
</compile_context>

<pallas_src>
import jax
import jax.numpy as jnp
from jax import lax
from jax.experimental import pallas as pl
from jax.experimental.pallas import tpu as pltpu


def _down_kernel(x_ref, w1_ref, s1_ref, b1_ref, w2_ref, s2_ref, b2_ref,
                 o_ref, pad1_ref, pad2_ref):
    """One (batch element, Ho row-strip) tile per grid step.

    x_ref  : (1, H+8, Wo, 2*Cin) bf16   H pre-padded by 4 zero rows per side,
                                        W pairs folded into the channel/lane axis
    w*_ref : (9, Csrc, Cdst)     bf16   per-tap conv weights, tap index = ky*3+kx
    s*_ref : (1, Cdst)           f32    BN scale
    b*_ref : (1, Cdst)           f32    BN shift
    o_ref  : (1, Th, Wo, Cout)
    pad1   : (Th+4, Wo+2, Cin)  bf16 scratch (pooled strip + 2-row halo, W-padded)
    pad2   : (Th+2, Wo+2, Cmid) bf16 scratch (conv1 strip + 1-row halo, W-padded)
    """
    strip = pl.program_id(1)
    n_strips = pl.num_programs(1)

    _, _, Wo, two_cin = x_ref.shape
    Cin = two_cin // 2
    Th = o_ref.shape[1]
    Cmid = w1_ref.shape[2]
    Cout = w2_ref.shape[2]
    rows_p = Th + 4          # pooled rows needed (strip + 2-row halo per side)
    rows_1 = Th + 2          # conv1 rows computed (strip + 1-row halo per side)

    def conv3x3_bn_relu(pad_ref, rows, w_ref, scale_ref, shift_ref):
        """3x3 conv (zero padding already present in pad_ref) as 9 accumulating
        MXU matmuls, then f32 BN scale+shift and ReLU."""
        c_src = pad_ref.shape[-1]
        acc = None
        for dy in range(3):
            for dx in range(3):
                view = pad_ref[dy:dy + rows, dx:dx + Wo, :].reshape(rows * Wo, c_src)
                part = jnp.dot(view, w_ref[dy * 3 + dx],
                               preferred_element_type=jnp.float32)
                acc = part if acc is None else acc + part
        return jnp.maximum(acc * scale_ref[...] + shift_ref[...], 0.0)

    # ---- MaxPool2d(2) on this strip's input rows (halo included) ---------------
    row0 = pl.multiple_of(strip * (2 * Th), 2 * Th)
    xs = x_ref[0, pl.ds(row0, 2 * rows_p), :, :]          # (2*(Th+4), Wo, 2*Cin)
    xw = jnp.maximum(xs[:, :, :Cin], xs[:, :, Cin:])      # W-pair pool (lane slice)
    xh = xw.reshape(rows_p, 2, Wo, Cin)                   # free leading-dim split
    pooled = jnp.maximum(xh[:, 0], xh[:, 1])              # (Th+4, Wo, Cin) bf16

    # ---- conv1: W border zeros + 9-tap accumulate + BN + ReLU -------------------
    # (H halo zeros come for free from the wrapper's zero pre-pad of the input.)
    pad1_ref[:, 0:1, :] = jnp.zeros((rows_p, 1, Cin), pad1_ref.dtype)
    pad1_ref[:, Wo + 1:Wo + 2, :] = jnp.zeros((rows_p, 1, Cin), pad1_ref.dtype)
    pad1_ref[:, 1:Wo + 1, :] = pooled
    h1 = conv3x3_bn_relu(pad1_ref, rows_1, w1_ref, s1_ref, b1_ref)
    h1 = h1.astype(jnp.bfloat16).reshape(rows_1, Wo, Cmid)

    # ---- conv2: W border zeros; zero the conv1-feature halo rows that fall
    # outside the image (they are conv2's zero padding, not conv1 output) ---------
    pad2_ref[:, 0:1, :] = jnp.zeros((rows_1, 1, Cmid), pad2_ref.dtype)
    pad2_ref[:, Wo + 1:Wo + 2, :] = jnp.zeros((rows_1, 1, Cmid), pad2_ref.dtype)
    pad2_ref[:, 1:Wo + 1, :] = h1

    @pl.when(strip == 0)
    def _():
        pad2_ref[0:1, :, :] = jnp.zeros((1, Wo + 2, Cmid), pad2_ref.dtype)

    @pl.when(strip == n_strips - 1)
    def _():
        pad2_ref[Th + 1:Th + 2, :, :] = jnp.zeros((1, Wo + 2, Cmid), pad2_ref.dtype)

    out = conv3x3_bn_relu(pad2_ref, Th, w2_ref, s2_ref, b2_ref)      # (Th*Wo, Cout) f32
    # TODO(synk): for very deep blocks (Cout >= 512), additionally tile conv2's N
    # dimension in 256-wide weight slices so the f32 accumulator stays <= (Th*Wo, 256).
    o_ref[0] = out.reshape(Th, Wo, Cout).astype(o_ref.dtype)


# ----------------------------- wrapper --------------------------------------

def _vmem_limit_bytes():
    """Generation-aware scoped-VMEM limit (~80% of physical, capped at 100 MiB)."""
    cap = None
    try:
        cap = getattr(pltpu.get_tpu_info(), "vmem_capacity_bytes", None)
    except Exception:
        cap = None
    if not cap:
        cap = 64 * 1024 * 1024                       # conservative (v7x per-TC)
    return int(min(cap * 4 // 5, 100 * 1024 * 1024))


def _pick_row_tile(ho, target=64):
    t = min(ho, target)
    while ho % t:
        t -= 1
    return t


def down_forward_nhwc(x_nhwc, w1, s1, b1, w2, s2, b2, *,
                      row_tile=None, out_dtype=jnp.float32):
    """Fused MaxPool2d(2) + DoubleConv. NHWC in -> NHWC out (no layout glue)."""
    N, H, W, Cin = x_nhwc.shape
    assert H % 2 == 0 and W % 2 == 0, "MaxPool2d(2) path assumes even H and W"
    Ho, Wo = H // 2, W // 2
    Cmid, Cout = w1.shape[2], w2.shape[2]
    Th = _pick_row_tile(Ho) if row_tile is None else row_tile
    assert Ho % Th == 0
    n_strips = Ho // Th

    # bf16 for the MXU. Pre-pad H by 4 zero rows per side (= 2 pooled halo rows):
    # every strip's halo slice is then in-range and pools to exact zeros. Fold the
    # W-pair axis into channels so the in-kernel W pool is a lane slice.
    x = x_nhwc.astype(jnp.bfloat16)
    x = jnp.pad(x, ((0, 0), (4, 4), (0, 0), (0, 0)))
    Hp = H + 8
    x = x.reshape(N, Hp, Wo, 2 * Cin)

    return pl.pallas_call(
        _down_kernel,
        out_shape=jax.ShapeDtypeStruct((N, Ho, Wo, Cout), out_dtype),
        grid_spec=pltpu.PrefetchScalarGridSpec(
            num_scalar_prefetch=0,
            grid=(N, n_strips),
            in_specs=[
                # Full (H-padded) image per batch element; the block index does not
                # change across the strip axis, so it is DMA'd once per batch
                # element and stays VMEM-resident while its strips are processed.
                pl.BlockSpec((1, Hp, Wo, 2 * Cin), lambda n, s: (n, 0, 0, 0)),
                pl.BlockSpec((9, Cin, Cmid), lambda n, s: (0, 0, 0)),
                pl.BlockSpec((1, Cmid), lambda n, s: (0, 0)),
                pl.BlockSpec((1, Cmid), lambda n, s: (0, 0)),
                pl.BlockSpec((9, Cmid, Cout), lambda n, s: (0, 0, 0)),
                pl.BlockSpec((1, Cout), lambda n, s: (0, 0)),
                pl.BlockSpec((1, Cout), lambda n, s: (0, 0)),
            ],
            out_specs=pl.BlockSpec((1, Th, Wo, Cout), lambda n, s: (n, s, 0, 0)),
            scratch_shapes=[
                pltpu.VMEM((Th + 4, Wo + 2, Cin), jnp.bfloat16),
                pltpu.VMEM((Th + 2, Wo + 2, Cmid), jnp.bfloat16),
            ],
        ),
        compiler_params=pltpu.CompilerParams(
            dimension_semantics=("parallel", "parallel"),
            vmem_limit_bytes=_vmem_limit_bytes(),
        ),
    )(x, w1, s1, b1, w2, s2, b2)


def down_forward(x_nchw, *params, **kw):
    """NCHW wrapper for parity with the PyTorch module. In a fused NHWC U-Net,
    call down_forward_nhwc directly and skip both transposes (pure HBM glue)."""
    out = down_forward_nhwc(jnp.transpose(x_nchw, (0, 2, 3, 1)), *params, **kw)
    return jnp.transpose(out, (0, 3, 1, 2))


# ----------------------------- parameter setup ------------------------------

def _fold_bn(gamma, beta, mean, var, eps=1e-5):
    scale = gamma / jnp.sqrt(var + eps)
    shift = beta - mean * scale
    return scale, shift


def prep_conv_bn(w_oihw, gamma, beta, mean, var, eps=1e-5):
    """Per-tap bf16 conv weights (9, Cin, Cout), tap index ky*3+kx, plus f32 BN
    scale / shift (1, Cout). The scale is kept out of the bf16 weights (applied in
    f32 after the matmul) to avoid precision loss for large/small gamma/sqrt(var)."""
    scale, shift = _fold_bn(gamma, beta, mean, var, eps)
    cout, cin = w_oihw.shape[0], w_oihw.shape[1]
    taps = jnp.transpose(w_oihw, (2, 3, 1, 0)).reshape(9, cin, cout).astype(jnp.bfloat16)
    return (taps,
            scale.reshape(1, cout).astype(jnp.float32),
            shift.reshape(1, cout).astype(jnp.float32))


def make_down_params(key, in_channels, out_channels):
    ks = jax.random.split(key, 10)
    w1 = 0.2 * jax.random.normal(ks[0], (out_channels, in_channels, 3, 3), jnp.float32)
    g1 = 1.0 + 0.1 * jax.random.normal(ks[1], (out_channels,), jnp.float32)
    be1 = 0.1 * jax.random.normal(ks[2], (out_channels,), jnp.float32)
    m1 = 0.05 * jax.random.normal(ks[3], (out_channels,), jnp.float32)
    v1 = 0.5 + jnp.abs(jax.random.normal(ks[4], (out_channels,), jnp.float32))

    w2 = 0.2 * jax.random.normal(ks[5], (out_channels, out_channels, 3, 3), jnp.float32)
    g2 = 1.0 + 0.1 * jax.random.normal(ks[6], (out_channels,), jnp.float32)
    be2 = 0.1 * jax.random.normal(ks[7], (out_channels,), jnp.float32)
    m2 = 0.05 * jax.random.normal(ks[8], (out_channels,), jnp.float32)
    v2 = 0.5 + jnp.abs(jax.random.normal(ks[9], (out_channels,), jnp.float32))
    return (w1, g1, be1, m1, v1), (w2, g2, be2, m2, v2)


# ----------------------------- plain-JAX reference --------------------------

def ref_forward(x_nchw, p1, p2, eps=1e-5):
    x = jnp.transpose(x_nchw, (0, 2, 3, 1)).astype(jnp.float32)
    x = lax.reduce_window(x, -jnp.inf, lax.max,
                          (1, 2, 2, 1), (1, 2, 2, 1), 'VALID')

    def cbr(h, params):
        w_oihw, gamma, beta, mean, var = params
        w_hwio = jnp.transpose(w_oihw, (2, 3, 1, 0))
        y = lax.conv_general_dilated(
            h, w_hwio, (1, 1), 'SAME',
            dimension_numbers=('NHWC', 'HWIO', 'NHWC'))
        scale = gamma / jnp.sqrt(var + eps)
        shift = beta - mean * scale
        return jnp.maximum(y * scale.reshape(1, 1, 1, -1)
                           + shift.reshape(1, 1, 1, -1), 0.0)

    x = cbr(x, p1)
    x = cbr(x, p2)
    return jnp.transpose(x, (0, 3, 1, 2))


if __name__ == "__main__":
    N, Cin, H, W = 2, 4, 16, 16
    Cout = 8

    key = jax.random.PRNGKey(0)
    kx, kp = jax.random.split(key)
    x = jax.random.normal(kx, (N, Cin, H, W), jnp.float32)

    p1, p2 = make_down_params(kp, Cin, Cout)
    w1, s1, b1 = prep_conv_bn(*p1)
    w2, s2, b2 = prep_conv_bn(*p2)

    # row_tile=2 -> 4 Ho-strips per image, exercising first / interior / last strips.
    out = jax.block_until_ready(down_forward(x, w1, s1, b1, w2, s2, b2, row_tile=2))
    ref = jax.block_until_ready(ref_forward(x, p1, p2))

    assert out.shape == (N, Cout, H // 2, W // 2), out.shape
    # Tolerance reflects bf16 activations/weights on the MXU (f32 accumulation);
    # a real bug (wrong tap ordering / halo handling) would give O(1) errors.
    max_err = float(jnp.max(jnp.abs(out - ref)))
    assert jnp.allclose(out, ref, rtol=5e-2, atol=1e-1), max_err

    # Optional bf16 output path (recommended on v6e/v7x when downstream accepts bf16).
    out_bf16 = jax.block_until_ready(
        down_forward(x, w1, s1, b1, w2, s2, b2, row_tile=2, out_dtype=jnp.bfloat16))
    assert jnp.allclose(out_bf16.astype(jnp.float32), ref, rtol=1e-1, atol=2e-1)

    print("KERNEL_OK")
</pallas_src>

<mosaic_0001>
module attributes {stable_mosaic.version = 11 : i64} {
  func.func @_down_kernel(%arg0: i32, %arg1: i32, %arg2: memref<1x24x8x8xbf16, #tpu.memory_space<vmem>>, %arg3: memref<9x4x8xbf16, #tpu.memory_space<vmem>>, %arg4: memref<1x8xf32, #tpu.memory_space<vmem>>, %arg5: memref<1x8xf32, #tpu.memory_space<vmem>>, %arg6: memref<9x8x8xbf16, #tpu.memory_space<vmem>>, %arg7: memref<1x8xf32, #tpu.memory_space<vmem>>, %arg8: memref<1x8xf32, #tpu.memory_space<vmem>>, %arg9: memref<1x2x8x8xf32, #tpu.memory_space<vmem>>, %arg10: memref<6x10x4xbf16, #tpu.memory_space<vmem>>, %arg11: memref<4x10x8xbf16, #tpu.memory_space<vmem>>) attributes {dimension_semantics = [#tpu.dimension_semantics<parallel>, #tpu.dimension_semantics<parallel>], iteration_bounds = array<i64: 2, 4>, scalar_prefetch = 0 : i64, scratch_operands = 2 : i64, tpu.core_type = #tpu.core_type<tc>, window_params = [{transform_indices = @transform_0, window_bounds = array<i64: 1, 24, 8, 8>}, {pipeline_mode = #tpu.pipeline_mode<synchronous>, transform_indices = @transform_1, window_bounds = array<i64: 9, 4, 8>}, {pipeline_mode = #tpu.pipeline_mode<synchronous>, transform_indices = @transform_2, window_bounds = array<i64: 1, 8>}, {pipeline_mode = #tpu.pipeline_mode<synchronous>, transform_indices = @transform_3, window_bounds = array<i64: 1, 8>}, {pipeline_mode = #tpu.pipeline_mode<synchronous>, transform_indices = @transform_4, window_bounds = array<i64: 9, 8, 8>}, {pipeline_mode = #tpu.pipeline_mode<synchronous>, transform_indices = @transform_5, window_bounds = array<i64: 1, 8>}, {pipeline_mode = #tpu.pipeline_mode<synchronous>, transform_indices = @transform_6, window_bounds = array<i64: 1, 8>}, {transform_indices = @transform_7, window_bounds = array<i64: 1, 2, 8, 8>}]} {
    %c4_i32 = arith.constant 4 : i32
    %0 = arith.muli %arg1, %c4_i32 : i32
    %1 = tpu.assume_multiple %0, 4 : i32
    %c0 = arith.constant 0 : index
    %2 = arith.index_cast %1 : i32 to index
    %c0_0 = arith.constant 0 : index
    %c0_1 = arith.constant 0 : index
    %3 = vector.load %arg2[%c0, %2, %c0_0, %c0_1] : memref<1x24x8x8xbf16, #tpu.memory_space<vmem>>, vector<1x12x8x8xbf16>
    %4 = vector.shape_cast %3 : vector<1x12x8x8xbf16> to vector<12x8x8xbf16>
    %5 = vector.extract_strided_slice %4 {offsets = [0, 0, 0], sizes = [12, 8, 4], strides = [1, 1, 1]} : vector<12x8x8xbf16> to vector<12x8x4xbf16>
    %6 = vector.extract_strided_slice %4 {offsets = [0, 0, 4], sizes = [12, 8, 4], strides = [1, 1, 1]} : vector<12x8x8xbf16> to vector<12x8x4xbf16>
    %7 = arith.maximumf %5, %6 : vector<12x8x4xbf16>
    %8 = vector.shape_cast %7 : vector<12x8x4xbf16> to vector<6x2x8x4xbf16>
    %9 = vector.extract_strided_slice %8 {offsets = [0, 0, 0, 0], sizes = [6, 1, 8, 4], strides = [1, 1, 1, 1]} : vector<6x2x8x4xbf16> to vector<6x1x8x4xbf16>
    %10 = vector.shape_cast %9 : vector<6x1x8x4xbf16> to vector<6x8x4xbf16>
    %11 = vector.extract_strided_slice %8 {offsets = [0, 1, 0, 0], sizes = [6, 1, 8, 4], strides = [1, 1, 1, 1]} : vector<6x2x8x4xbf16> to vector<6x1x8x4xbf16>
    %12 = vector.shape_cast %11 : vector<6x1x8x4xbf16> to vector<6x8x4xbf16>
    %13 = arith.maximumf %10, %12 : vector<6x8x4xbf16>
    %cst = arith.constant 0.000000e+00 : bf16
    %14 = vector.broadcast %cst : bf16 to vector<6x1x4xbf16>
    %c0_2 = arith.constant 0 : index
    %c0_3 = arith.constant 0 : index
    %c0_4 = arith.constant 0 : index
    %15 = vector.load %arg10[%c0_2, %c0_3, %c0_4] : memref<6x10x4xbf16, #tpu.memory_space<vmem>>, vector<6x1x4xbf16>
    tpu.vector_store %arg10[%c0_2, %c0_3, %c0_4], %14 {strides = array<i32>} : memref<6x10x4xbf16, #tpu.memory_space<vmem>>, vector<6x1x4xbf16>,
    %cst_5 = arith.constant 0.000000e+00 : bf16
    %16 = vector.broadcast %cst_5 : bf16 to vector<6x1x4xbf16>
    %c0_6 = arith.constant 0 : index
    %c9 = arith.constant 9 : index
    %c0_7 = arith.constant 0 : index
    %17 = vector.load %arg10[%c0_6, %c9, %c0_7] : memref<6x10x4xbf16, #tpu.memory_space<vmem>>, vector<6x1x4xbf16>
    tpu.vector_store %arg10[%c0_6, %c9, %c0_7], %16 {strides = array<i32>} : memref<6x10x4xbf16, #tpu.memory_space<vmem>>, vector<6x1x4xbf16>,
    %c0_8 = arith.constant 0 : index
    %c1 = arith.constant 1 : index
    %c0_9 = arith.constant 0 : index
    %18 = vector.load %arg10[%c0_8, %c1, %c0_9] : memref<6x10x4xbf16, #tpu.memory_space<vmem>>, vector<6x8x4xbf16>
    tpu.vector_store %arg10[%c0_8, %c1, %c0_9], %13 {strides = array<i32>} : memref<6x10x4xbf16, #tpu.memory_space<vmem>>, vector<6x8x4xbf16>,
    %c0_10 = arith.constant 0 : index
    %c0_11 = arith.constant 0 : index
    %c0_12 = arith.constant 0 : index
    %19 = vector.load %arg10[%c0_10, %c0_11, %c0_12] : memref<6x10x4xbf16, #tpu.memory_space<vmem>>, vector<4x8x4xbf16>
    %20 = vector.shape_cast %19 : vector<4x8x4xbf16> to vector<32x4xbf16>
    %c0_13 = arith.constant 0 : index
    %c0_14 = arith.constant 0 : index
    %c0_15 = arith.constant 0 : index
    %21 = vector.load %arg3[%c0_13, %c0_14, %c0_15] : memref<9x4x8xbf16, #tpu.memory_space<vmem>>, vector<1x4x8xbf16>
    %22 = vector.shape_cast %21 : vector<1x4x8xbf16> to vector<4x8xbf16>
    %cst_16 = arith.constant dense<0.000000e+00> : vector<32x8xf32>
    %23 = tpu.matmul %20, %22, %cst_16 {dimension_numbers = #tpu.dot_dimension_numbers<[1], [0], [0], [1], [0, 0, 1, 1], [], []>} : vector<32x4xbf16>, vector<4x8xbf16>, vector<32x8xf32> -> vector<32x8xf32>
    %c0_17 = arith.constant 0 : index
    %c1_18 = arith.constant 1 : index
    %c0_19 = arith.constant 0 : index
    %24 = vector.load %arg10[%c0_17, %c1_18, %c0_19] : memref<6x10x4xbf16, #tpu.memory_space<vmem>>, vector<4x8x4xbf16>
    %25 = vector.shape_cast %24 : vector<4x8x4xbf16> to vector<32x4xbf16>
    %c1_20 = arith.constant 1 : index
    %c0_21 = arith.constant 0 : index
    %c0_22 = arith.constant 0 : index
    %26 = vector.load %arg3[%c1_20, %c0_21, %c0_22] : memref<9x4x8xbf16, #tpu.memory_space<vmem>>, vector<1x4x8xbf16>
    %27 = vector.shape_cast %26 : vector<1x4x8xbf16> to vector<4x8xbf16>
    %cst_23 = arith.constant dense<0.000000e+00> : vector<32x8xf32>
    %28 = tpu.matmul %25, %27, %cst_23 {dimension_numbers = #tpu.dot_dimension_numbers<[1], [0], [0], [1], [0, 0, 1, 1], [], []>} : vector<32x4xbf16>, vector<4x8xbf16>, vector<32x8xf32> -> vector<32x8xf32>
    %29 = arith.addf %23, %28 : vector<32x8xf32>
    %c0_24 = arith.constant 0 : index
    %c2 = arith.constant 2 : index
    %c0_25 = arith.constant 0 : index
    %30 = vector.load %arg10[%c0_24, %c2, %c0_25] : memref<6x10x4xbf16, #tpu.memory_space<vmem>>, vector<4x8x4xbf16>
    %31 = vector.shape_cast %30 : vector<4x8x4xbf16> to vector<32x4xbf16>
    %c2_26 = arith.constant 2 : index
    %c0_27 = arith.constant 0 : index
    %c0_28 = arith.constant 0 : index
    %32 = vector.load %arg3[%c2_26, %c0_27, %c0_28] : memref<9x4x8xbf16, #tpu.memory_space<vmem>>, vector<1x4x8xbf16>
    %33 = vector.shape_cast %32 : vector<1x4x8xbf16> to vector<4x8xbf16>
    %cst_29 = arith.constant dense<0.000000e+00> : vector<32x8xf32>
    %34 = tpu.matmul %31, %33, %cst_29 {dimension_numbers = #tpu.dot_dimension_numbers<[1], [0], [0], [1], [0, 0, 1, 1], [], []>} : vector<32x4xbf16>, vector<4x8xbf16>, vector<32x8xf32> -> vector<32x8xf32>
    %35 = arith.addf %29, %34 : vector<32x8xf32>
    %c1_30 = arith.constant 1 : index
    %c0_31 = arith.constant 0 : index
    %c0_32 = arith.constant 0 : index
    %36 = vector.load %arg10[%c1_30, %c0_31, %c0_32] : memref<6x10x4xbf16, #tpu.memory_space<vmem>>, vector<4x8x4xbf16>
    %37 = vector.shape_cast %36 : vector<4x8x4xbf16> to vector<32x4xbf16>
    %c3 = arith.constant 3 : index
    %c0_33 = arith.constant 0 : index
    %c0_34 = arith.constant 0 : index
    %38 = vector.load %arg3[%c3, %c0_33, %c0_34] : memref<9x4x8xbf16, #tpu.memory_space<vmem>>, vector<1x4x8xbf16>
    %39 = vector.shape_cast %38 : vector<1x4x8xbf16> to vector<4x8xbf16>
    %cst_35 = arith.constant dense<0.000000e+00> : vector<32x8xf32>
    %40 = tpu.matmul %37, %39, %cst_35 {dimension_numbers = #tpu.dot_dimension_numbers<[1], [0], [0], [1], [0, 0, 1, 1], [], []>} : vector<32x4xbf16>, vector<4x8xbf16>, vector<32x8xf32> -> vector<32x8xf32>
    %41 = arith.addf %35, %40 : vector<32x8xf32>
    %c1_36 = arith.constant 1 : index
    %c1_37 = arith.constant 1 : index
    %c0_38 = arith.constant 0 : index
    %42 = vector.load %arg10[%c1_36, %c1_37, %c0_38] : memref<6x10x4xbf16, #tpu.memory_space<vmem>>, vector<4x8x4xbf16>
    %43 = vector.shape_cast %42 : vector<4x8x4xbf16> to vector<32x4xbf16>
    %c4 = arith.constant 4 : index
    %c0_39 = arith.constant 0 : index
    %c0_40 = arith.constant 0 : index
    %44 = vector.load %arg3[%c4, %c0_39, %c0_40] : memref<9x4x8xbf16, #tpu.memory_space<vmem>>, vector<1x4x8xbf16>
    %45 = vector.shape_cast %44 : vector<1x4x8xbf16> to vector<4x8xbf16>
    %cst_41 = arith.constant dense<0.000000e+00> : vector<32x8xf32>
    %46 = tpu.matmul %43, %45, %cst_41 {dimension_numbers = #tpu.dot_dimension_numbers<[1], [0], [0], [1], [0, 0, 1, 1], [], []>} : vector<32x4xbf16>, vector<4x8xbf16>, vector<32x8xf32> -> vector<32x8xf32>
    %47 = arith.addf %41, %46 : vector<32x8xf32>
    %c1_42 = arith.constant 1 : index
    %c2_43 = arith.constant 2 : index
    %c0_44 = arith.constant 0 : index
    %48 = vector.load %arg10[%c1_42, %c2_43, %c0_44] : memref<6x10x4xbf16, #tpu.memory_space<vmem>>, vector<4x8x4xbf16>
    %49 = vector.shape_cast %48 : vector<4x8x4xbf16> to vector<32x4xbf16>
    %c5 = arith.constant 5 : index
    %c0_45 = arith.constant 0 : index
    %c0_46 = arith.constant 0 : index
    %50 = vector.load %arg3[%c5, %c0_45, %c0_46] : memref<9x4x8xbf16, #tpu.memory_space<vmem>>, vector<1x4x8xbf16>
    %51 = vector.shape_cast %50 : vector<1x4x8xbf16> to vector<4x8xbf16>
    %cst_47 = arith.constant dense<0.000000e+00> : vector<32x8xf32>
    %52 = tpu.matmul %49, %51, %cst_47 {dimension_numbers = #tpu.dot_dimension_numbers<[1], [0], [0], [1], [0, 0, 1, 1], [], []>} : vector<32x4xbf16>, vector<4x8xbf16>, vector<32x8xf32> -> vector<32x8xf32>
    %53 = arith.addf %47, %52 : vector<32x8xf32>
    %c2_48 = arith.constant 2 : index
    %c0_49 = arith.constant 0 : index
    %c0_50 = arith.constant 0 : index
    %54 = vector.load %arg10[%c2_48, %c0_49, %c0_50] : memref<6x10x4xbf16, #tpu.memory_space<vmem>>, vector<4x8x4xbf16>
    %55 = vector.shape_cast %54 : vector<4x8x4xbf16> to vector<32x4xbf16>
    %c6 = arith.constant 6 : index
    %c0_51 = arith.constant 0 : index
    %c0_52 = arith.constant 0 : index
    %56 = vector.load %arg3[%c6, %c0_51, %c0_52] : memref<9x4x8xbf16, #tpu.memory_space<vmem>>, vector<1x4x8xbf16>
    %57 = vector.shape_cast %56 : vector<1x4x8xbf16> to vector<4x8xbf16>
    %cst_53 = arith.constant dense<0.000000e+00> : vector<32x8xf32>
    %58 = tpu.matmul %55, %57, %cst_53 {dimension_numbers = #tpu.dot_dimension_numbers<[1], [0], [0], [1], [0, 0, 1, 1], [], []>} : vector<32x4xbf16>, vector<4x8xbf16>, vector<32x8xf32> -> vector<32x8xf32>
    %59 = arith.addf %53, %58 : vector<32x8xf32>
    %c2_54 = arith.constant 2 : index
    %c1_55 = arith.constant 1 : index
    %c0_56 = arith.constant 0 : index
    %60 = vector.load %arg10[%c2_54, %c1_55, %c0_56] : memref<6x10x4xbf16, #tpu.memory_space<vmem>>, vector<4x8x4xbf16>
    %61 = vector.shape_cast %60 : vector<4x8x4xbf16> to vector<32x4xbf16>
    %c7 = arith.constant 7 : index
    %c0_57 = arith.constant 0 : index
    %c0_58 = arith.constant 0 : index
    %62 = vector.load %arg3[%c7, %c0_57, %c0_58] : memref<9x4x8xbf16, #tpu.memory_space<vmem>>, vector<1x4x8xbf16>
    %63 = vector.shape_cast %62 : vector<1x4x8xbf16> to vector<4x8xbf16>
    %cst_59 = arith.constant dense<0.000000e+00> : vector<32x8xf32>
    %64 = tpu.matmul %61, %63, %cst_59 {dimension_numbers = #tpu.dot_dimension_numbers<[1], [0], [0], [1], [0, 0, 1, 1], [], []>} : vector<32x4xbf16>, vector<4x8xbf16>, vector<32x8xf32> -> vector<32x8xf32>
    %65 = arith.addf %59, %64 : vector<32x8xf32>
    %c2_60 = arith.constant 2 : index
    %c2_61 = arith.constant 2 : index
    %c0_62 = arith.constant 0 : index
    %66 = vector.load %arg10[%c2_60, %c2_61, %c0_62] : memref<6x10x4xbf16, #tpu.memory_space<vmem>>, vector<4x8x4xbf16>
    %67 = vector.shape_cast %66 : vector<4x8x4xbf16> to vector<32x4xbf16>
    %c8 = arith.constant 8 : index
    %c0_63 = arith.constant 0 : index
    %c0_64 = arith.constant 0 : index
    %68 = vector.load %arg3[%c8, %c0_63, %c0_64] : memref<9x4x8xbf16, #tpu.memory_space<vmem>>, vector<1x4x8xbf16>
    %69 = vector.shape_cast %68 : vector<1x4x8xbf16> to vector<4x8xbf16>
    %cst_65 = arith.constant dense<0.000000e+00> : vector<32x8xf32>
    %70 = tpu.matmul %67, %69, %cst_65 {dimension_numbers = #tpu.dot_dimension_numbers<[1], [0], [0], [1], [0, 0, 1, 1], [], []>} : vector<32x4xbf16>, vector<4x8xbf16>, vector<32x8xf32> -> vector<32x8xf32>
    %71 = arith.addf %65, %70 : vector<32x8xf32>
    %c0_66 = arith.constant 0 : index
    %c0_67 = arith.constant 0 : index
    %72 = vector.load %arg4[%c0_66, %c0_67] : memref<1x8xf32, #tpu.memory_space<vmem>>, vector<1x8xf32>
    %73 = vector.broadcast %72 : vector<1x8xf32> to vector<32x8xf32>
    %74 = arith.mulf %71, %73 : vector<32x8xf32>
    %c0_68 = arith.constant 0 : index
    %c0_69 = arith.constant 0 : index
    %75 = vector.load %arg5[%c0_68, %c0_69] : memref<1x8xf32, #tpu.memory_space<vmem>>, vector<1x8xf32>
    %76 = vector.broadcast %75 : vector<1x8xf32> to vector<32x8xf32>
    %77 = arith.addf %74, %76 : vector<32x8xf32>
    %cst_70 = arith.constant 0.000000e+00 : f32
    %78 = vector.broadcast %cst_70 : f32 to vector<32x8xf32>
    %79 = arith.maximumf %77, %78 : vector<32x8xf32>
    %80 = arith.truncf %79 : vector<32x8xf32> to vector<32x8xbf16>
    %81 = vector.shape_cast %80 : vector<32x8xbf16> to vector<4x8x8xbf16>
    %cst_71 = arith.constant 0.000000e+00 : bf16
    %82 = vector.broadcast %cst_71 : bf16 to vector<4x1x8xbf16>
    %c0_72 = arith.constant 0 : index
    %c0_73 = arith.constant 0 : index
    %c0_74 = arith.constant 0 : index
    %83 = vector.load %arg11[%c0_72, %c0_73, %c0_74] : memref<4x10x8xbf16, #tpu.memory_space<vmem>>, vector<4x1x8xbf16>
    tpu.vector_store %arg11[%c0_72, %c0_73, %c0_74], %82 {strides = array<i32>} : memref<4x10x8xbf16, #tpu.memory_space<vmem>>, vector<4x1x8xbf16>,
    %cst_75 = arith.constant 0.000000e+00 : bf16
    %84 = vector.broadcast %cst_75 : bf16 to vector<4x1x8xbf16>
    %c0_76 = arith.constant 0 : index
    %c9_77 = arith.constant 9 : index
    %c0_78 = arith.constant 0 : index
    %85 = vector.load %arg11[%c0_76, %c9_77, %c0_78] : memref<4x10x8xbf16, #tpu.memory_space<vmem>>, vector<4x1x8xbf16>
    tpu.vector_store %arg11[%c0_76, %c9_77, %c0_78], %84 {strides = array<i32>} : memref<4x10x8xbf16, #tpu.memory_space<vmem>>, vector<4x1x8xbf16>,
    %c0_79 = arith.constant 0 : index
    %c1_80 = arith.constant 1 : index
    %c0_81 = arith.constant 0 : index
    %86 = vector.load %arg11[%c0_79, %c1_80, %c0_81] : memref<4x10x8xbf16, #tpu.memory_space<vmem>>, vector<4x8x8xbf16>
    tpu.vector_store %arg11[%c0_79, %c1_80, %c0_81], %81 {strides = array<i32>} : memref<4x10x8xbf16, #tpu.memory_space<vmem>>, vector<4x8x8xbf16>,
    %c0_i32 = arith.constant 0 : i32
    %87 = arith.cmpi eq, %arg1, %c0_i32 : i32
    %88 = arith.extui %87 : i1 to i32
    %c0_i32_82 = arith.constant 0 : i32
    %89 = arith.cmpi ne, %88, %c0_i32_82 : i32
    scf.if %89 {
      %cst_156 = arith.constant 0.000000e+00 : bf16
      %158 = vector.broadcast %cst_156 : bf16 to vector<1x10x8xbf16>
      %c0_157 = arith.constant 0 : index
      %c0_158 = arith.constant 0 : index
      %c0_159 = arith.constant 0 : index
      %159 = vector.load %arg11[%c0_157, %c0_158, %c0_159] : memref<4x10x8xbf16, #tpu.memory_space<vmem>>, vector<1x10x8xbf16>
      tpu.vector_store %arg11[%c0_157, %c0_158, %c0_159], %158 {strides = array<i32>} : memref<4x10x8xbf16, #tpu.memory_space<vmem>>, vector<1x10x8xbf16>,
    } else {
    }
    %c3_i32 = arith.constant 3 : i32
    %90 = arith.cmpi eq, %arg1, %c3_i32 : i32
    %91 = arith.extui %90 : i1 to i32
    %c0_i32_83 = arith.constant 0 : i32
    %92 = arith.cmpi ne, %91, %c0_i32_83 : i32
    scf.if %92 {
      %cst_156 = arith.constant 0.000000e+00 : bf16
      %158 = vector.broadcast %cst_156 : bf16 to vector<1x10x8xbf16>
      %c3_157 = arith.constant 3 : index
      %c0_158 = arith.constant 0 : index
      %c0_159 = arith.constant 0 : index
      %159 = vector.load %arg11[%c3_157, %c0_158, %c0_159] : memref<4x10x8xbf16, #tpu.memory_space<vmem>>, vector<1x10x8xbf16>
      tpu.vector_store %arg11[%c3_157, %c0_158, %c0_159], %158 {strides = array<i32>} : memref<4x10x8xbf16, #tpu.memory_space<vmem>>, vector<1x10x8xbf16>,
    } else {
    }
    %c0_84 = arith.constant 0 : index
    %c0_85 = arith.constant 0 : index
    %c0_86 = arith.constant 0 : index
    %93 = vector.load %arg11[%c0_84, %c0_85, %c0_86] : memref<4x10x8xbf16, #tpu.memory_space<vmem>>, vector<2x8x8xbf16>
    %94 = vector.shape_cast %93 : vector<2x8x8xbf16> to vector<16x8xbf16>
    %c0_87 = arith.constant 0 : index
    %c0_88 = arith.constant 0 : index
    %c0_89 = arith.constant 0 : index
    %95 = vector.load %arg6[%c0_87, %c0_88, %c0_89] : memref<9x8x8xbf16, #tpu.memory_space<vmem>>, vector<1x8x8xbf16>
    %96 = vector.shape_cast %95 : vector<1x8x8xbf16> to vector<8x8xbf16>
    %cst_90 = arith.constant dense<0.000000e+00> : vector<16x8xf32>
    %97 = tpu.matmul %94, %96, %cst_90 {dimension_numbers = #tpu.dot_dimension_numbers<[1], [0], [0], [1], [0, 0, 1, 1], [], []>} : vector<16x8xbf16>, vector<8x8xbf16>, vector<16x8xf32> -> vector<16x8xf32>
    %c0_91 = arith.constant 0 : index
    %c1_92 = arith.constant 1 : index
    %c0_93 = arith.constant 0 : index
    %98 = vector.load %arg11[%c0_91, %c1_92, %c0_93] : memref<4x10x8xbf16, #tpu.memory_space<vmem>>, vector<2x8x8xbf16>
    %99 = vector.shape_cast %98 : vector<2x8x8xbf16> to vector<16x8xbf16>
    %c1_94 = arith.constant 1 : index
    %c0_95 = arith.constant 0 : index
    %c0_96 = arith.constant 0 : index
    %100 = vector.load %arg6[%c1_94, %c0_95, %c0_96] : memref<9x8x8xbf16, #tpu.memory_space<vmem>>, vector<1x8x8xbf16>
    %101 = vector.shape_cast %100 : vector<1x8x8xbf16> to vector<8x8xbf16>
    %cst_97 = arith.constant dense<0.000000e+00> : vector<16x8xf32>
    %102 = tpu.matmul %99, %101, %cst_97 {dimension_numbers = #tpu.dot_dimension_numbers<[1], [0], [0], [1], [0, 0, 1, 1], [], []>} : vector<16x8xbf16>, vector<8x8xbf16>, vector<16x8xf32> -> vector<16x8xf32>
    %103 = arith.addf %97, %102 : vector<16x8xf32>
    %c0_98 = arith.constant 0 : index
    %c2_99 = arith.constant 2 : index
    %c0_100 = arith.constant 0 : index
    %104 = vector.load %arg11[%c0_98, %c2_99, %c0_100] : memref<4x10x8xbf16, #tpu.memory_space<vmem>>, vector<2x8x8xbf16>
    %105 = vector.shape_cast %104 : vector<2x8x8xbf16> to vector<16x8xbf16>
    %c2_101 = arith.constant 2 : index
    %c0_102 = arith.constant 0 : index
    %c0_103 = arith.constant 0 : index
    %106 = vector.load %arg6[%c2_101, %c0_102, %c0_103] : memref<9x8x8xbf16, #tpu.memory_space<vmem>>, vector<1x8x8xbf16>
    %107 = vector.shape_cast %106 : vector<1x8x8xbf16> to vector<8x8xbf16>
    %cst_104 = arith.constant dense<0.000000e+00> : vector<16x8xf32>
    %108 = tpu.matmul %105, %107, %cst_104 {dimension_numbers = #tpu.dot_dimension_numbers<[1], [0], [0], [1], [0, 0, 1, 1], [], []>} : vector<16x8xbf16>, vector<8x8xbf16>, vector<16x8xf32> -> vector<16x8xf32>
    %109 = arith.addf %103, %108 : vector<16x8xf32>
    %c1_105 = arith.constant 1 : index
    %c0_106 = arith.constant 0 : index
    %c0_107 = arith.constant 0 : index
    %110 = vector.load %arg11[%c1_105, %c0_106, %c0_107] : memref<4x10x8xbf16, #tpu.memory_space<vmem>>, vector<2x8x8xbf16>
    %111 = vector.shape_cast %110 : vector<2x8x8xbf16> to vector<16x8xbf16>
    %c3_108 = arith.constant 3 : index
    %c0_109 = arith.constant 0 : index
    %c0_110 = arith.constant 0 : index
    %112 = vector.load %arg6[%c3_108, %c0_109, %c0_110] : memref<9x8x8xbf16, #tpu.memory_space<vmem>>, vector<1x8x8xbf16>
    %113 = vector.shape_cast %112 : vector<1x8x8xbf16> to vector<8x8xbf16>
    %cst_111 = arith.constant dense<0.000000e+00> : vector<16x8xf32>
    %114 = tpu.matmul %111, %113, %cst_111 {dimension_numbers = #tpu.dot_dimension_numbers<[1], [0], [0], [1], [0, 0, 1, 1], [], []>} : vector<16x8xbf16>, vector<8x8xbf16>, vector<16x8xf32> -> vector<16x8xf32>
    %115 = arith.addf %109, %114 : vector<16x8xf32>
    %c1_112 = arith.constant 1 : index
    %c1_113 = arith.constant 1 : index
    %c0_114 = arith.constant 0 : index
    %116 = vector.load %arg11[%c1_112, %c1_113, %c0_114] : memref<4x10x8xbf16, #tpu.memory_space<vmem>>, vector<2x8x8xbf16>
    %117 = vector.shape_cast %116 : vector<2x8x8xbf16> to vector<16x8xbf16>
    %c4_115 = arith.constant 4 : index
    %c0_116 = arith.constant 0 : index
    %c0_117 = arith.constant 0 : index
    %118 = vector.load %arg6[%c4_115, %c0_116, %c0_117] : memref<9x8x8xbf16, #tpu.memory_space<vmem>>, vector<1x8x8xbf16>
    %119 = vector.shape_cast %118 : vector<1x8x8xbf16> to vector<8x8xbf16>
    %cst_118 = arith.constant dense<0.000000e+00> : vector<16x8xf32>
    %120 = tpu.matmul %117, %119, %cst_118 {dimension_numbers = #tpu.dot_dimension_numbers<[1], [0], [0], [1], [0, 0, 1, 1], [], []>} : vector<16x8xbf16>, vector<8x8xbf16>, vector<16x8xf32> -> vector<16x8xf32>
    %121 = arith.addf %115, %120 : vector<16x8xf32>
    %c1_119 = arith.constant 1 : index
    %c2_120 = arith.constant 2 : index
    %c0_121 = arith.constant 0 : index
    %122 = vector.load %arg11[%c1_119, %c2_120, %c0_121] : memref<4x10x8xbf16, #tpu.memory_space<vmem>>, vector<2x8x8xbf16>
    %123 = vector.shape_cast %122 : vector<2x8x8xbf16> to vector<16x8xbf16>
    %c5_122 = arith.constant 5 : index
    %c0_123 = arith.constant 0 : index
    %c0_124 = arith.constant 0 : index
    %124 = vector.load %arg6[%c5_122, %c0_123, %c0_124] : memref<9x8x8xbf16, #tpu.memory_space<vmem>>, vector<1x8x8xbf16>
    %125 = vector.shape_cast %124 : vector<1x8x8xbf16> to vector<8x8xbf16>
    %cst_125 = arith.constant dense<0.000000e+00> : vector<16x8xf32>
    %126 = tpu.matmul %123, %125, %cst_125 {dimension_numbers = #tpu.dot_dimension_numbers<[1], [0], [0], [1], [0, 0, 1, 1], [], []>} : vector<16x8xbf16>, vector<8x8xbf16>, vector<16x8xf32> -> vector<16x8xf32>
    %127 = arith.addf %121, %126 : vector<16x8xf32>
    %c2_126 = arith.constant 2 : index
    %c0_127 = arith.constant 0 : index
    %c0_128 = arith.constant 0 : index
    %128 = vector.load %arg11[%c2_126, %c0_127, %c0_128] : memref<4x10x8xbf16, #tpu.memory_space<vmem>>, vector<2x8x8xbf16>
    %129 = vector.shape_cast %128 : vector<2x8x8xbf16> to vector<16x8xbf16>
    %c6_129 = arith.constant 6 : index
    %c0_130 = arith.constant 0 : index
    %c0_131 = arith.constant 0 : index
    %130 = vector.load %arg6[%c6_129, %c0_130, %c0_131] : memref<9x8x8xbf16, #tpu.memory_space<vmem>>, vector<1x8x8xbf16>
    %131 = vector.shape_cast %130 : vector<1x8x8xbf16> to vector<8x8xbf16>
    %cst_132 = arith.constant dense<0.000000e+00> : vector<16x8xf32>
    %132 = tpu.matmul %129, %131, %cst_132 {dimension_numbers = #tpu.dot_dimension_numbers<[1], [0], [0], [1], [0, 0, 1, 1], [], []>} : vector<16x8xbf16>, vector<8x8xbf16>, vector<16x8xf32> -> vector<16x8xf32>
    %133 = arith.addf %127, %132 : vector<16x8xf32>
    %c2_133 = arith.constant 2 : index
    %c1_134 = arith.constant 1 : index
    %c0_135 = arith.constant 0 : index
    %134 = vector.load %arg11[%c2_133, %c1_134, %c0_135] : memref<4x10x8xbf16, #tpu.memory_space<vmem>>, vector<2x8x8xbf16>
    %135 = vector.shape_cast %134 : vector<2x8x8xbf16> to vector<16x8xbf16>
    %c7_136 = arith.constant 7 : index
    %c0_137 = arith.constant 0 : index
    %c0_138 = arith.constant 0 : index
    %136 = vector.load %arg6[%c7_136, %c0_137, %c0_138] : memref<9x8x8xbf16, #tpu.memory_space<vmem>>, vector<1x8x8xbf16>
    %137 = vector.shape_cast %136 : vector<1x8x8xbf16> to vector<8x8xbf16>
    %cst_139 = arith.constant dense<0.000000e+00> : vector<16x8xf32>
    %138 = tpu.matmul %135, %137, %cst_139 {dimension_numbers = #tpu.dot_dimension_numbers<[1], [0], [0], [1], [0, 0, 1, 1], [], []>} : vector<16x8xbf16>, vector<8x8xbf16>, vector<16x8xf32> -> vector<16x8xf32>
    %139 = arith.addf %133, %138 : vector<16x8xf32>
    %c2_140 = arith.constant 2 : index
    %c2_141 = arith.constant 2 : index
    %c0_142 = arith.constant 0 : index
    %140 = vector.load %arg11[%c2_140, %c2_141, %c0_142] : memref<4x10x8xbf16, #tpu.memory_space<vmem>>, vector<2x8x8xbf16>
    %141 = vector.shape_cast %140 : vector<2x8x8xbf16> to vector<16x8xbf16>
    %c8_143 = arith.constant 8 : index
    %c0_144 = arith.constant 0 : index
    %c0_145 = arith.constant 0 : index
    %142 = vector.load %arg6[%c8_143, %c0_144, %c0_145] : memref<9x8x8xbf16, #tpu.memory_space<vmem>>, vector<1x8x8xbf16>
    %143 = vector.shape_cast %142 : vector<1x8x8xbf16> to vector<8x8xbf16>
    %cst_146 = arith.constant dense<0.000000e+00> : vector<16x8xf32>
    %144 = tpu.matmul %141, %143, %cst_146 {dimension_numbers = #tpu.dot_dimension_numbers<[1], [0], [0], [1], [0, 0, 1, 1], [], []>} : vector<16x8xbf16>, vector<8x8xbf16>, vector<16x8xf32> -> vector<16x8xf32>
    %145 = arith.addf %139, %144 : vector<16x8xf32>
    %c0_147 = arith.constant 0 : index
    %c0_148 = arith.constant 0 : index
    %146 = vector.load %arg7[%c0_147, %c0_148] : memref<1x8xf32, #tpu.memory_space<vmem>>, vector<1x8xf32>
    %147 = vector.broadcast %146 : vector<1x8xf32> to vector<16x8xf32>
    %148 = arith.mulf %145, %147 : vector<16x8xf32>
    %c0_149 = arith.constant 0 : index
    %c0_150 = arith.constant 0 : index
    %149 = vector.load %arg8[%c0_149, %c0_150] : memref<1x8xf32, #tpu.memory_space<vmem>>, vector<1x8xf32>
    %150 = vector.broadcast %149 : vector<1x8xf32> to vector<16x8xf32>
    %151 = arith.addf %148, %150 : vector<16x8xf32>
    %cst_151 = arith.constant 0.000000e+00 : f32
    %152 = vector.broadcast %cst_151 : f32 to vector<16x8xf32>
    %153 = arith.maximumf %151, %152 : vector<16x8xf32>
    %154 = vector.shape_cast %153 : vector<16x8xf32> to vector<2x8x8xf32>
    %c0_152 = arith.constant 0 : index
    %c0_153 = arith.constant 0 : index
    %c0_154 = arith.constant 0 : index
    %c0_155 = arith.constant 0 : index
    %155 = vector.load %arg9[%c0_152, %c0_153, %c0_154, %c0_155] : memref<1x2x8x8xf32, #tpu.memory_space<vmem>>, vector<1x2x8x8xf32>
    %156 = vector.shape_cast %155 : vector<1x2x8x8xf32> to vector<2x8x8xf32>
    %157 = vector.shape_cast %154 : vector<2x8x8xf32> to vector<1x2x8x8xf32>
    tpu.vector_store %arg9[%c0_152, %c0_153, %c0_154, %c0_155], %157 {strides = array<i32>} : memref<1x2x8x8xf32, #tpu.memory_space<vmem>>, vector<1x2x8x8xf32>,
    return
  }
  func.func @transform_0(%arg0: i32, %arg1: i32) -> (i32, i32, i32, i32) {
    %c0_i32 = arith.constant 0 : i32
    %c0_i32_0 = arith.constant 0 : i32
    %c0_i32_1 = arith.constant 0 : i32
    %c0_i32_2 = arith.constant 0 : i32
    return %arg0, %c0_i32, %c0_i32_0, %c0_i32_1 : i32, i32, i32, i32
  }
  func.func @transform_1(%arg0: i32, %arg1: i32) -> (i32, i32, i32) {
    %c0_i32 = arith.constant 0 : i32
    %c0_i32_0 = arith.constant 0 : i32
    %c0_i32_1 = arith.constant 0 : i32
    %c0_i32_2 = arith.constant 0 : i32
    return %c0_i32, %c0_i32_0, %c0_i32_1 : i32, i32, i32
  }
  func.func @transform_2(%arg0: i32, %arg1: i32) -> (i32, i32) {
    %c0_i32 = arith.constant 0 : i32
    %c0_i32_0 = arith.constant 0 : i32
    %c0_i32_1 = arith.constant 0 : i32
    return %c0_i32, %c0_i32_0 : i32, i32
  }
  func.func @transform_3(%arg0: i32, %arg1: i32) -> (i32, i32) {
    %c0_i32 = arith.constant 0 : i32
    %c0_i32_0 = arith.constant 0 : i32
    %c0_i32_1 = arith.constant 0 : i32
    return %c0_i32, %c0_i32_0 : i32, i32
  }
  func.func @transform_4(%arg0: i32, %arg1: i32) -> (i32, i32, i32) {
    %c0_i32 = arith.constant 0 : i32
    %c0_i32_0 = arith.constant 0 : i32
    %c0_i32_1 = arith.constant 0 : i32
    %c0_i32_2 = arith.constant 0 : i32
    return %c0_i32, %c0_i32_0, %c0_i32_1 : i32, i32, i32
  }
  func.func @transform_5(%arg0: i32, %arg1: i32) -> (i32, i32) {
    %c0_i32 = arith.constant 0 : i32
    %c0_i32_0 = arith.constant 0 : i32
    %c0_i32_1 = arith.constant 0 : i32
    return %c0_i32, %c0_i32_0 : i32, i32
  }
  func.func @transform_6(%arg0: i32, %arg1: i32) -> (i32, i32) {
    %c0_i32 = arith.constant 0 : i32
    %c0_i32_0 = arith.constant 0 : i32
    %c0_i32_1 = arith.constant 0 : i32
    return %c0_i32, %c0_i32_0 : i32, i32
  }
  func.func @transform_7(%arg0: i32, %arg1: i32) -> (i32, i32, i32, i32) {
    %c0_i32 = arith.constant 0 : i32
    %c0_i32_0 = arith.constant 0 : i32
    %c0_i32_1 = arith.constant 0 : i32
    return %arg0, %arg1, %c0_i32, %c0_i32_0 : i32, i32, i32, i32
  }
}

</mosaic_0001>

<llo_original>
// kernel: tpu_custom_call.1
$region0: #{tpu_custom_call.1}
  #allocation0 [shape = 'u32[]', space=smem, size = 0x4, offset = 0x4, fixed_abs, tag = 'smem constant byte address 0x4 - core index']
  #allocation1 [shape = 'u32[144,128]{1,0:T(1,128)}', space=vmem, size = 0x12000, scoped, tag = 'internal scratch']
  #allocation2 [shape = 'bf16[6,10,4]{2,1,0:T(8,128)(2,1)}', space=vmem, size = 0x6000, scoped, tag = 'scratch operand']
  #allocation3 [shape = 'bf16[4,10,8]{2,1,0:T(8,128)(2,1)}', space=vmem, size = 0x4000, scoped, tag = 'scratch operand']
  %s0 = inlined_call_operand.vmem [shape: bf16[2,24,8,8], index: 0, kind: input, shape index: {}]
  %s1 = inlined_call_operand.vmem [shape: bf16[9,4,8], index: 1, kind: input, shape index: {}]
  %s2 = inlined_call_operand.vmem [shape: f32[1,8], index: 2, kind: input, shape index: {}]
  %s3 = inlined_call_operand.vmem [shape: f32[1,8], index: 3, kind: input, shape index: {}]
  %s4 = inlined_call_operand.vmem [shape: bf16[9,8,8], index: 4, kind: input, shape index: {}]
  %s5 = inlined_call_operand.vmem [shape: f32[1,8], index: 5, kind: input, shape index: {}]
  %s6 = inlined_call_operand.vmem [shape: f32[1,8], index: 6, kind: input, shape index: {}]
  %s7 = inlined_call_operand.hbm [shape: f32[2,8,8,8], index: 7, kind: output, shape index: {}]
  %s8 = sld [smem:[#allocation0]]
  $region69: #{tpu_custom_call.1} parent=0
    _
  %s10 = ssub.s32 1, %s8
  %s11 = scalar_select 0, %s10, %s8
  $region1: #{tpu_custom_call.1} parent=0
    #allocation4 [shape = 'u8[16384]{0}', space=vmem, size = 0x4000, scoped, tag = 'output window, operand 0']
    #allocation5 [shape = 's32[2]{0}', space=sflag, size = 0x8, scoped, tag = 'scoped memory for tpu_custom_call.1']
    %12 = vsyncpa [#allocation5], 0
    %s13 = scalar_lea.sflag [#allocation5], 1
    %14 = vsyncpa %s13, 0
    loop: start=0, step=1, limit=10
    $region2: #{tpu_custom_call.1} parent=1 // loop_pre_header
      _
    $region3: #{tpu_custom_call.1} parent=1 // loop_header
      %s16 = sphi 0, %s20
      %p17 = scmp.ge.s32.totalorder %s16, 10
      %s23 = sphi 0, %s35
      %s24 = sphi 0, %s31
      %s25 = sphi 0, %s23
      %s26 = sphi 0, %s24
      %s27 = sphi 0, %s25
      %s28 = sphi 0, %s26
      %s38 = sphi 0, %s40
      %s41 = sphi 0, %s38
      %s42 = sphi 0, %s41
      %s58 = sphi 0, %s42
      %s62 = sphi 0, %s62
      %s64 = sphi 0, %s62
      %s65 = sphi 0, %s64
      %s79 = sphi 0, %s65
      %s83 = sphi 0, %s83
      %s85 = sphi 0, %s83
      %s86 = sphi 0, %s85
      %s100 = sphi 0, %s86
      %s104 = sphi 0, %s104
      %s106 = sphi 0, %s104
      %s107 = sphi 0, %s106
      %s121 = sphi 0, %s107
      %s125 = sphi 0, %s125
      %s127 = sphi 0, %s125
      %s128 = sphi 0, %s127
      %s142 = sphi 0, %s128
      %s146 = sphi 0, %s146
      %s148 = sphi 0, %s146
      %s149 = sphi 0, %s148
      %s163 = sphi 0, %s149
      %s167 = sphi 0, %s167
      %s169 = sphi 0, %s167
      %s170 = sphi 0, %s169
      %s184 = sphi 0, %s170
      %s192 = sphi 0, %s194
      %s195 = sphi 0, %s192
      %s196 = sphi 0, %s195
      %s212 = sphi 0, %s196
    $region4: #{tpu_custom_call.1} parent=1 // loop_header_branch
      %19 = sbr.rel (%p17) target = $region8
    $region5: #{tpu_custom_call.1} parent=1 // loop_body
      %s21 = ssub.s32 %s16, 1
      %s22 = ssub.s32 %s16, 2
      %s29 = sadd.s32 1, %s24
      %p30 = scmp.ge.s32.totalorder %s29, 4
      %s31 = scalar_select %p30, 0, %s29
      %s32 = sadd.s32 1, %s23
      %s33 = scalar_select %p30, %s32, %s23
      %p34 = scmp.ge.s32.totalorder %s33, 2
      %s35 = scalar_select %p34, 0, %s33
      %s36 = ssub.s32 %s23, %s35
      %p37 = scmp.eq.s32.totalorder %s36, 0
      %s39 = sadd.s32 %s38, 1
      %s40 = scalar_select %p37, %s38, %s39
      %p43 = pneg %p37
      %p44 = scmp.eq.s32.totalorder %s16, 7
      %p45 = por %p43, %p44
      %p46 = scmp.ne.s32.totalorder %s38, %s41
      %p47 = scmp.eq.s32.totalorder %s16, 0
      %p48 = por %p46, %p47
      %p49 = scmp.ne.s32.totalorder %s38, %s41
      %p50 = scmp.eq.s32.totalorder %s21, 7
      %p51 = por %p49, %p50
      %p52 = scmp.ne.s32.totalorder %s41, %s42
      %p53 = scmp.eq.s32.totalorder %s21, 0
      %p54 = por %p52, %p53
      %p55 = scmp.ne.s32.totalorder %s41, %s42
      %p56 = scmp.eq.s32.totalorder %s22, 7
      %p57 = por %p55, %p56
      %p59 = scmp.ne.s32.totalorder %s42, %s58
      %p60 = scmp.eq.s32.totalorder %s22, 0
      %p61 = por %p59, %p60
      %s63 = sadd.s32 %s62, 1
      %p66 = scmp.eq.s32.totalorder %s16, 7
      %p67 = scmp.ne.s32.totalorder %s62, %s64
      %p68 = scmp.eq.s32.totalorder %s16, 0
      %p69 = por %p67, %p68
      %p70 = scmp.ne.s32.totalorder %s62, %s64
      %p71 = scmp.eq.s32.totalorder %s21, 7
      %p72 = por %p70, %p71
      %p73 = scmp.ne.s32.totalorder %s64, %s65
      %p74 = scmp.eq.s32.totalorder %s21, 0
      %p75 = por %p73, %p74
      %p76 = scmp.ne.s32.totalorder %s64, %s65
      %p77 = scmp.eq.s32.totalorder %s22, 7
      %p78 = por %p76, %p77
      %p80 = scmp.ne.s32.totalorder %s65, %s79
      %p81 = scmp.eq.s32.totalorder %s22, 0
      %p82 = por %p80, %p81
      %s84 = sadd.s32 %s83, 1
      %p87 = scmp.eq.s32.totalorder %s16, 7
      %p88 = scmp.ne.s32.totalorder %s83, %s85
      %p89 = scmp.eq.s32.totalorder %s16, 0
      %p90 = por %p88, %p89
      %p91 = scmp.ne.s32.totalorder %s83, %s85
      %p92 = scmp.eq.s32.totalorder %s21, 7
      %p93 = por %p91, %p92
      %p94 = scmp.ne.s32.totalorder %s85, %s86
      %p95 = scmp.eq.s32.totalorder %s21, 0
      %p96 = por %p94, %p95
      %p97 = scmp.ne.s32.totalorder %s85, %s86
      %p98 = scmp.eq.s32.totalorder %s22, 7
      %p99 = por %p97, %p98
      %p101 = scmp.ne.s32.totalorder %s86, %s100
      %p102 = scmp.eq.s32.totalorder %s22, 0
      %p103 = por %p101, %p102
      %s105 = sadd.s32 %s104, 1
      %p108 = scmp.eq.s32.totalorder %s16, 7
      %p109 = scmp.ne.s32.totalorder %s104, %s106
      %p110 = scmp.eq.s32.totalorder %s16, 0
      %p111 = por %p109, %p110
      %p112 = scmp.ne.s32.totalorder %s104, %s106
      %p113 = scmp.eq.s32.totalorder %s21, 7
      %p114 = por %p112, %p113
      %p115 = scmp.ne.s32.totalorder %s106, %s107
      %p116 = scmp.eq.s32.totalorder %s21, 0
      %p117 = por %p115, %p116
      %p118 = scmp.ne.s32.totalorder %s106, %s107
      %p119 = scmp.eq.s32.totalorder %s22, 7
      %p120 = por %p118, %p119
      %p122 = scmp.ne.s32.totalorder %s107, %s121
      %p123 = scmp.eq.s32.totalorder %s22, 0
      %p124 = por %p122, %p123
      %s126 = sadd.s32 %s125, 1
      %p129 = scmp.eq.s32.totalorder %s16, 7
      %p130 = scmp.ne.s32.totalorder %s125, %s127
      %p131 = scmp.eq.s32.totalorder %s16, 0
      %p132 = por %p130, %p131
      %p133 = scmp.ne.s32.totalorder %s125, %s127
      %p134 = scmp.eq.s32.totalorder %s21, 7
      %p135 = por %p133, %p134
      %p136 = scmp.ne.s32.totalorder %s127, %s128
      %p137 = scmp.eq.s32.totalorder %s21, 0
      %p138 = por %p136, %p137
      %p139 = scmp.ne.s32.totalorder %s127, %s128
      %p140 = scmp.eq.s32.totalorder %s22, 7
      %p141 = por %p139, %p140
      %p143 = scmp.ne.s32.totalorder %s128, %s142
      %p144 = scmp.eq.s32.totalorder %s22, 0
      %p145 = por %p143, %p144
      %s147 = sadd.s32 %s146, 1
      %p150 = scmp.eq.s32.totalorder %s16, 7
      %p151 = scmp.ne.s32.totalorder %s146, %s148
      %p152 = scmp.eq.s32.totalorder %s16, 0
      %p153 = por %p151, %p152
      %p154 = scmp.ne.s32.totalorder %s146, %s148
      %p155 = scmp.eq.s32.totalorder %s21, 7
      %p156 = por %p154, %p155
      %p157 = scmp.ne.s32.totalorder %s148, %s149
      %p158 = scmp.eq.s32.totalorder %s21, 0
      %p159 = por %p157, %p158
      %p160 = scmp.ne.s32.totalorder %s148, %s149
      %p161 = scmp.eq.s32.totalorder %s22, 7
      %p162 = por %p160, %p161
      %p164 = scmp.ne.s32.totalorder %s149, %s163
      %p165 = scmp.eq.s32.totalorder %s22, 0
      %p166 = por %p164, %p165
      %s168 = sadd.s32 %s167, 1
      %p171 = scmp.eq.s32.totalorder %s16, 7
      %p172 = scmp.ne.s32.totalorder %s167, %s169
      %p173 = scmp.eq.s32.totalorder %s16, 0
      %p174 = por %p172, %p173
      %p175 = scmp.ne.s32.totalorder %s167, %s169
      %p176 = scmp.eq.s32.totalorder %s21, 7
      %p177 = por %p175, %p176
      %p178 = scmp.ne.s32.totalorder %s169, %s170
      %p179 = scmp.eq.s32.totalorder %s21, 0
      %p180 = por %p178, %p179
      %p181 = scmp.ne.s32.totalorder %s169, %s170
      %p182 = scmp.eq.s32.totalorder %s22, 7
      %p183 = por %p181, %p182
      %p185 = scmp.ne.s32.totalorder %s170, %s184
      %p186 = scmp.eq.s32.totalorder %s22, 0
      %p187 = por %p185, %p186
      %s188 = ssub.s32 %s23, %s35
      %s189 = ssub.s32 %s24, %s31
      %s190 = sor.u32 %s188, %s189
      %p191 = scmp.eq.s32.totalorder %s190, 0
      %s193 = sadd.s32 %s192, 1
      %s194 = scalar_select %p191, %s192, %s193
      %p197 = pneg %p191
      %p198 = scmp.eq.s32.totalorder %s16, 7
      %p199 = por %p197, %p198
      %p200 = scmp.ne.s32.totalorder %s192, %s195
      %p201 = scmp.eq.s32.totalorder %s16, 0
      %p202 = por %p200, %p201
      %p203 = scmp.ne.s32.totalorder %s192, %s195
      %p204 = scmp.eq.s32.totalorder %s21, 7
      %p205 = por %p203, %p204
      %p206 = scmp.ne.s32.totalorder %s195, %s196
      %p207 = scmp.eq.s32.totalorder %s21, 0
      %p208 = por %p206, %p207
      %p209 = scmp.ne.s32.totalorder %s195, %s196
      %p210 = scmp.eq.s32.totalorder %s22, 7
      %p211 = por %p209, %p210
      %p213 = scmp.ne.s32.totalorder %s196, %s212
      %p214 = scmp.eq.s32.totalorder %s22, 0
      %p215 = por %p213, %p214
      %p216 = scmp.le.s32.totalorder 1, %s16
      %p217 = scmp.lt.s32.totalorder %s16, 9
      %p218 = pnand %p216, %p217
      %p219 = pneg %p218
      // Predicated region
      $region9: #{tpu_custom_call.1} parent=5 // pred_check
        _
      $region10: #{tpu_custom_call.1} parent=5 // pred_check_branch
        %221 = sbr.rel (%p218) target = $region12
      $region11: #{tpu_custom_call.1} parent=5 // pred_region
        %s222 = ssub.s32 %s16, 1
        // Predicated region
        $region13: #{tpu_custom_call.1} parent=11 // pred_check
          %p223 = pneg %p75
        $region14: #{tpu_custom_call.1} parent=11 // pred_check_branch
          %225 = sbr.rel (%p223) target = $region16
        $region15: #{tpu_custom_call.1} parent=11 // pred_region
          _
        $region16: #{tpu_custom_call.1} parent=11 // pred_fallthru
          _
        // Predicated region
        $region17: #{tpu_custom_call.1} parent=11 // pred_check
          %p226 = pneg %p96
        $region18: #{tpu_custom_call.1} parent=11 // pred_check_branch
          %228 = sbr.rel (%p226) target = $region20
        $region19: #{tpu_custom_call.1} parent=11 // pred_region
          _
        $region20: #{tpu_custom_call.1} parent=11 // pred_fallthru
          _
        // Predicated region
        $region21: #{tpu_custom_call.1} parent=11 // pred_check
          %p229 = pneg %p117
        $region22: #{tpu_custom_call.1} parent=11 // pred_check_branch
          %231 = sbr.rel (%p229) target = $region24
        $region23: #{tpu_custom_call.1} parent=11 // pred_region
          _
        $region24: #{tpu_custom_call.1} parent=11 // pred_fallthru
          _
        // Predicated region
        $region25: #{tpu_custom_call.1} parent=11 // pred_check
          %p232 = pneg %p138
        $region26: #{tpu_custom_call.1} parent=11 // pred_check_branch
          %234 = sbr.rel (%p232) target = $region28
        $region27: #{tpu_custom_call.1} parent=11 // pred_region
          _
        $region28: #{tpu_custom_call.1} parent=11 // pred_fallthru
          _
        // Predicated region
        $region29: #{tpu_custom_call.1} parent=11 // pred_check
          %p235 = pneg %p159
        $region30: #{tpu_custom_call.1} parent=11 // pred_check_branch
          %237 = sbr.rel (%p235) target = $region32
        $region31: #{tpu_custom_call.1} parent=11 // pred_region
          _
        $region32: #{tpu_custom_call.1} parent=11 // pred_fallthru
          _
        // Predicated region
        $region33: #{tpu_custom_call.1} parent=11 // pred_check
          %p238 = pneg %p180
        $region34: #{tpu_custom_call.1} parent=11 // pred_check_branch
          %240 = sbr.rel (%p238) target = $region36
        $region35: #{tpu_custom_call.1} parent=11 // pred_region
          _
        $region36: #{tpu_custom_call.1} parent=11 // pred_fallthru
          _
      $region12: #{tpu_custom_call.1} parent=5 // pred_fallthru
        _
      %p241 = scmp.lt.s32.totalorder %s16, 8
      // Predicated region
      $region37: #{tpu_custom_call.1} parent=5 // pred_check
        %p242 = pneg %p241
      $region38: #{tpu_custom_call.1} parent=5 // pred_check_branch
        %244 = sbr.rel (%p242) target = $region40
      $region39: #{tpu_custom_call.1} parent=5 // pred_region
        // Predicated region
        $region41: #{tpu_custom_call.1} parent=39 // pred_check
          %p245 = pneg %p48
        $region42: #{tpu_custom_call.1} parent=39 // pred_check_branch
          %247 = sbr.rel (%p245) target = $region44
        $region43: #{tpu_custom_call.1} parent=39 // pred_region
          %p248 = scmp.lt.s32.totalorder %s23, 1
          %s249 = scalar_select %p248, %s23, 1
          %s250 = smul.addr %s249, 24
          %s251 = smul.addr %s250, 4
          %s252 = scalar_lea.vmem %s0, %s251
        $region44: #{tpu_custom_call.1} parent=39 // pred_fallthru
          _
      $region40: #{tpu_custom_call.1} parent=5 // pred_fallthru
        _
      %p253 = scmp.le.s32.totalorder 1, %s16
      %p254 = scmp.lt.s32.totalorder %s16, 9
      %p255 = pnand %p253, %p254
      %p256 = pneg %p255
      // Predicated region
      $region45: #{tpu_custom_call.1} parent=5 // pred_check
        _
      $region46: #{tpu_custom_call.1} parent=5 // pred_check_branch
        %258 = sbr.rel (%p255) target = $region48
      $region47: #{tpu_custom_call.1} parent=5 // pred_region
        %s259 = ssub.s32 %s16, 1
        %p260 = scmp.lt.s32.totalorder %s25, 1
        %s261 = scalar_select %p260, %s25, 1
        %s262 = smul.addr %s261, 24
        %s263 = smul.addr %s262, 4
        %s264 = scalar_lea.vmem %s0, %s263
        %p265 = pneg %p54
        %p266 = pneg %p51
        %p267 = pneg %p75
        %p268 = pneg %p72
        %p269 = pneg %p96
        %p270 = pneg %p93
        %p271 = pneg %p117
        %p272 = pneg %p114
        %p273 = pneg %p138
        %p274 = pneg %p135
        %p275 = pneg %p159
        %p276 = pneg %p156
        %p277 = pneg %p180
        %p278 = pneg %p177
        %p279 = pneg %p208
        %p280 = pneg %p205
        %s281 = sand.u32 %s195, 1
        %s282 = scalar_lea.sflag [#allocation5], %s281
        %s283 = sand.u32 %s195, 1
        %s284 = smul.addr %s283, 16
        %s285 = scalar_lea.vmem [#allocation4], %s284
        %p286 = scmp.lt.s32.totalorder %s25, 1
        %s287 = scalar_select %p286, %s25, 1
        %s288 = smul.addr %s287, 24
        %s289 = smul.addr %s288, 4
        %s290 = scalar_lea.vmem %s0, %s289
        %s291 = smul.u32 2, %s26
        %s293 = smul.u32 %s26, 4
        %s294 = smul.addr %s293, 4
        %s295 = scalar_lea.vmem %s290, %s294
        %v296 = vld [vmem:[%s295] sm:$0xf]
        %v297 = vld [vmem:[%s295 + $0x4] sm:$0xf]
        %v298 = vld [vmem:[%s295 + $0x8] sm:$0xf]
        %v299 = vld [vmem:[%s295 + $0xc] sm:$0xf]
        %v300 = vld [vmem:[%s295 + $0x10] sm:$0xf]
        %v301 = vld [vmem:[%s295 + $0x14] sm:$0xf]
        %v302 = vld [vmem:[%s295 + $0x18] sm:$0xf]
        %v303 = vld [vmem:[%s295 + $0x1c] sm:$0xf]
        %v304 = vld [vmem:[%s295 + $0x20] sm:$0xf]
        %v305 = vld [vmem:[%s295 + $0x24] sm:$0xf]
        %v306 = vld [vmem:[%s295 + $0x28] sm:$0xf]
        %v307 = vld [vmem:[%s295 + $0x2c] sm:$0xf]
        %320 = vrot.lane.b32.xlu0 %v296, 124
        %v321 = vpop.permute.xlu0 %320
        %322 = vrot.lane.b32.xlu0 %v297, 124
        %v323 = vpop.permute.xlu0 %322
        %324 = vrot.lane.b32.xlu0 %v298, 124
        %v325 = vpop.permute.xlu0 %324
        %326 = vrot.lane.b32.xlu0 %v299, 124
        %v327 = vpop.permute.xlu0 %326
        %328 = vrot.lane.b32.xlu0 %v300, 124
        %v329 = vpop.permute.xlu0 %328
        %330 = vrot.lane.b32.xlu0 %v301, 124
        %v331 = vpop.permute.xlu0 %330
        %332 = vrot.lane.b32.xlu0 %v302, 124
        %v333 = vpop.permute.xlu0 %332
        %334 = vrot.lane.b32.xlu0 %v303, 124
        %v335 = vpop.permute.xlu0 %334
        %336 = vrot.lane.b32.xlu0 %v304, 124
        %v337 = vpop.permute.xlu0 %336
        %338 = vrot.lane.b32.xlu0 %v305, 124
        %v339 = vpop.permute.xlu0 %338
        %340 = vrot.lane.b32.xlu0 %v306, 124
        %v341 = vpop.permute.xlu0 %340
        %342 = vrot.lane.b32.xlu0 %v307, 124
        %v343 = vpop.permute.xlu0 %342
        %v356 = vmax.bf16 %v296, %v321
        %v357 = vmax.bf16 %v297, %v323
        %v358 = vmax.bf16 %v298, %v325
        %v359 = vmax.bf16 %v299, %v327
        %v360 = vmax.bf16 %v300, %v329
        %v361 = vmax.bf16 %v301, %v331
        %v362 = vmax.bf16 %v302, %v333
        %v363 = vmax.bf16 %v303, %v335
        %v364 = vmax.bf16 %v304, %v337
        %v365 = vmax.bf16 %v305, %v339
        %v366 = vmax.bf16 %v306, %v341
        %v367 = vmax.bf16 %v307, %v343
        %v368 = vmax.bf16 %v356, %v357
        %v369 = vmax.bf16 %v358, %v359
        %v370 = vmax.bf16 %v360, %v361
        %v371 = vmax.bf16 %v362, %v363
        %v372 = vmax.bf16 %v364, %v365
        %v373 = vmax.bf16 %v366, %v367
        %vm374 = vcmask 24576
        %vm375 = vsmask.f32 256
        %vm376 = vmand %vm374, %vm375
        %v377 = vld [vmem:[#allocation2] sm:$0x1]
        %v378 = vsel %vm376, 0, %v377
        %379 = vst [vmem:[#allocation2] sm:$0x1] %v378
        %v380 = vld [vmem:[#allocation2 + $0x8] sm:$0x1]
        %v381 = vsel %vm376, 0, %v380
        %382 = vst [vmem:[#allocation2 + $0x8] sm:$0x1] %v381
        %v383 = vld [vmem:[#allocation2 + $0x10] sm:$0x1]
        %v384 = vsel %vm376, 0, %v383
        %385 = vst [vmem:[#allocation2 + $0x10] sm:$0x1] %v384
        %v386 = vld [vmem:[#allocation2 + $0x18] sm:$0x1]
        %v387 = vsel %vm376, 0, %v386
        %388 = vst [vmem:[#allocation2 + $0x18] sm:$0x1] %v387
        %v389 = vld [vmem:[#allocation2 + $0x20] sm:$0x1]
        %v390 = vsel %vm376, 0, %v389
        %391 = vst [vmem:[#allocation2 + $0x20] sm:$0x1] %v390
        %v392 = vld [vmem:[#allocation2 + $0x28] sm:$0x1]
        %v393 = vsel %vm376, 0, %v392
        %394 = vst [vmem:[#allocation2 + $0x28] sm:$0x1] %v393
        %vm395 = vsmask.f32 7938
        %vm396 = vmand %vm374, %vm395
        %v397 = vld [vmem:[#allocation2 + $0x4] sm:$0x1]
        %v398 = vsel %vm396, 0, %v397
        %399 = vst [vmem:[#allocation2 + $0x4] sm:$0x1] %v398
        %v400 = vld [vmem:[#allocation2 + $0xc] sm:$0x1]
        %v401 = vsel %vm396, 0, %v400
        %402 = vst [vmem:[#allocation2 + $0xc] sm:$0x1] %v401
        %v403 = vld [vmem:[#allocation2 + $0x14] sm:$0x1]
        %v404 = vsel %vm396, 0, %v403
        %405 = vst [vmem:[#allocation2 + $0x14] sm:$0x1] %v404
        %v406 = vld [vmem:[#allocation2 + $0x1c] sm:$0x1]
        %v407 = vsel %vm396, 0, %v406
        %408 = vst [vmem:[#allocation2 + $0x1c] sm:$0x1] %v407
        %v409 = vld [vmem:[#allocation2 + $0x24] sm:$0x1]
        %v410 = vsel %vm396, 0, %v409
        %411 = vst [vmem:[#allocation2 + $0x24] sm:$0x1] %v410
        %v412 = vld [vmem:[#allocation2 + $0x2c] sm:$0x1]
        %v413 = vsel %vm396, 0, %v412
        %414 = vst [vmem:[#allocation2 + $0x2c] sm:$0x1] %v413
        %v416 = vshrl.u32 %v368, 16
        %v418 = vrot.slane %v416, 7
        %v419 = vshll.u32 %v368, 16
        %v421 = vor.u32 %v418, %v419
        %v422 = vrot.slane %v418, 4
        %v424 = vshrl.u32 %v369, 16
        %v426 = vrot.slane %v424, 7
        %v427 = vshll.u32 %v369, 16
        %v429 = vor.u32 %v426, %v427
        %v430 = vrot.slane %v426, 4
        %v432 = vshrl.u32 %v370, 16
        %v434 = vrot.slane %v432, 7
        %v435 = vshll.u32 %v370, 16
        %v437 = vor.u32 %v434, %v435
        %v438 = vrot.slane %v434, 4
        %v440 = vshrl.u32 %v371, 16
        %v442 = vrot.slane %v440, 7
        %v443 = vshll.u32 %v371, 16
        %v445 = vor.u32 %v442, %v443
        %v446 = vrot.slane %v442, 4
        %v448 = vshrl.u32 %v372, 16
        %v450 = vrot.slane %v448, 7
        %v451 = vshll.u32 %v372, 16
        %v453 = vor.u32 %v450, %v451
        %v454 = vrot.slane %v450, 4
        %v456 = vshrl.u32 %v373, 16
        %v458 = vrot.slane %v456, 7
        %v459 = vshll.u32 %v373, 16
        %v461 = vor.u32 %v458, %v459
        %v462 = vrot.slane %v458, 4
        %vm475 = vcmask 27648
        %vm476 = vmand %vm475, %vm395
        %v477 = vld [vmem:[#allocation2] sm:$0xf]
        %v478 = vsel %vm476, %v421, %v477
        %479 = vst [vmem:[#allocation2] sm:$0xf] %v478
        %v480 = vld [vmem:[#allocation2 + $0x4] sm:$0x1]
        %v481 = vsel %vm376, %v422, %v480
        %482 = vst [vmem:[#allocation2 + $0x4] sm:$0x1] %v481
        %v483 = vld [vmem:[#allocation2 + $0x8] sm:$0xf]
        %v484 = vsel %vm476, %v429, %v483
        %485 = vst [vmem:[#allocation2 + $0x8] sm:$0xf] %v484
        %v486 = vld [vmem:[#allocation2 + $0xc] sm:$0x1]
        %v487 = vsel %vm376, %v430, %v486
        %488 = vst [vmem:[#allocation2 + $0xc] sm:$0x1] %v487
        %v489 = vld [vmem:[#allocation2 + $0x10] sm:$0xf]
        %v490 = vsel %vm476, %v437, %v489
        %491 = vst [vmem:[#allocation2 + $0x10] sm:$0xf] %v490
        %v492 = vld [vmem:[#allocation2 + $0x14] sm:$0x1]
        %v493 = vsel %vm376, %v438, %v492
        %494 = vst [vmem:[#allocation2 + $0x14] sm:$0x1] %v493
        %v495 = vld [vmem:[#allocation2 + $0x18] sm:$0xf]
        %v496 = vsel %vm476, %v445, %v495
        %497 = vst [vmem:[#allocation2 + $0x18] sm:$0xf] %v496
        %v498 = vld [vmem:[#allocation2 + $0x1c] sm:$0x1]
        %v499 = vsel %vm376, %v446, %v498
        %500 = vst [vmem:[#allocation2 + $0x1c] sm:$0x1] %v499
        %v501 = vld [vmem:[#allocation2 + $0x20] sm:$0xf]
        %v502 = vsel %vm476, %v453, %v501
        %503 = vst [vmem:[#allocation2 + $0x20] sm:$0xf] %v502
        %v504 = vld [vmem:[#allocation2 + $0x24] sm:$0x1]
        %v505 = vsel %vm376, %v454, %v504
        %506 = vst [vmem:[#allocation2 + $0x24] sm:$0x1] %v505
        %v507 = vld [vmem:[#allocation2 + $0x28] sm:$0xf]
        %v508 = vsel %vm476, %v461, %v507
        %509 = vst [vmem:[#allocation2 + $0x28] sm:$0xf] %v508
        %v510 = vld [vmem:[#allocation2 + $0x2c] sm:$0x1]
        %v511 = vsel %vm376, %v462, %v510
        %512 = vst [vmem:[#allocation2 + $0x2c] sm:$0x1] %v511
        %v513 = vld [vmem:[#allocation2] sm:$0xf]
        %v514 = vld [vmem:[#allocation2 + $0x8] sm:$0xf]
        %v515 = vld [vmem:[#allocation2 + $0x10] sm:$0xf]
        %v516 = vld [vmem:[#allocation2 + $0x18] sm:$0xf]
        %v517 = vld [vmem:[%s1] sm:$0x3]
        %v518 = vld [vmem:[#allocation2 + $0x4] sm:$0x1]
        %v519 = vld [vmem:[#allocation2 + $0xc] sm:$0x1]
        %v520 = vld [vmem:[#allocation2 + $0x14] sm:$0x1]
        %v521 = vld [vmem:[#allocation2 + $0x1c] sm:$0x1]
        %vm522 = vsmask.f32 3328
        %vm523 = vsmask.f32 7440
        %vm524 = vmor %vm522, %vm523
        %v526 = vshrl.u32 %v513, 16
        %v528 = vrot.slane %v526, 4
        %v529 = vshll.u32 %v513, 16
        %v531 = vrot.slane %v529, 5
        %v532 = vor.u32 %v528, %v531
        %v533 = vrot.slane %v532, 4
        %v535 = vshll.u32 %v518, 16
        %v537 = vrot.slane %v535, 5
        %v538 = vsel %vm524, %v533, %v537
        %v540 = vshrl.u32 %v514, 16
        %v542 = vrot.slane %v540, 4
        %v543 = vshll.u32 %v514, 16
        %v545 = vrot.slane %v543, 5
        %v546 = vor.u32 %v542, %v545
        %v547 = vrot.slane %v546, 4
        %v549 = vshll.u32 %v519, 16
        %v551 = vrot.slane %v549, 5
        %v552 = vsel %vm524, %v547, %v551
        %v554 = vshrl.u32 %v515, 16
        %v556 = vrot.slane %v554, 4
        %v557 = vshll.u32 %v515, 16
        %v559 = vrot.slane %v557, 5
        %v560 = vor.u32 %v556, %v559
        %v561 = vrot.slane %v560, 4
        %v563 = vshll.u32 %v520, 16
        %v565 = vrot.slane %v563, 5
        %v566 = vsel %vm524, %v561, %v565
        %v568 = vshrl.u32 %v516, 16
        %v570 = vrot.slane %v568, 4
        %v571 = vshll.u32 %v516, 16
        %v573 = vrot.slane %v571, 5
        %v574 = vor.u32 %v570, %v573
        %v575 = vrot.slane %v574, 4
        %v577 = vshll.u32 %v521, 16
        %v579 = vrot.slane %v577, 5
        %v580 = vsel %vm524, %v575, %v579
        %s581 = scalar_lea.vmem %s1, 2
        %v582 = vld [vmem:[%s581] sm:$0x3]
        %v583 = vunpack.c.l.b16 %v538
        %v584 = vunpack.c.l.b16 %v552
        %v585 = vunpack.c.l.b16 %v566
        %v586 = vunpack.c.l.b16 %v580
        %v587 = vpack.c.b16 %v584, %v583
        %v588 = vpack.c.b16 %v586, %v585
        %vm589 = vcmask 31744
        %v591 = vsel %vm589, %v587, 0
        %v594 = vsel %vm589, %v588, 0
        %vm596 = vcmask 1041408
        %v598 = vsel %vm596, %v582, 0
        %600 = vmatprep.subr.bf16.mxu0 0
        %601 = vmatpush1.bf16.msra.mxu0 0
        %602 = vmatprep.subr.bf16.mxu0 0
        %603 = vmatpush1.bf16.msra.mxu0 0
        %604 = vmatprep.subr.bf16.mxu0 0
        %605 = vmatpush1.bf16.msra.mxu0 0
        %606 = vmatprep.subr.bf16.mxu0 0
        %607 = vmatpush1.bf16.msra.mxu0 0
        %608 = vmatprep.subr.bf16.mxu0 0
        %609 = vmatpush1.bf16.msra.mxu0 0
        %610 = vmatprep.subr.bf16.mxu0 0
        %611 = vmatpush1.bf16.msra.mxu0 0
        %612 = vmatprep.subr.bf16.mxu0 0
        %613 = vmatpush1.bf16.msra.mxu0 0
        %614 = vmatprep.subr.bf16.mxu0 0
        %615 = vmatpush1.bf16.msra.mxu0 %v598
        %616 = vmatprep.subr.bf16.mxu0 0
        %617 = vmatpush2.bf16.msra.mxu0 0
        %618 = vmatprep.subr.bf16.mxu0 0
        %619 = vmatpush2.bf16.msra.mxu0 0
        %620 = vmatprep.subr.bf16.mxu0 0
        %621 = vmatpush2.bf16.msra.mxu0 0
        %622 = vmatprep.subr.bf16.mxu0 0
        %623 = vmatpush2.bf16.msra.mxu0 0
        %624 = vmatprep.subr.bf16.mxu0 0
        %625 = vmatpush2.bf16.msra.mxu0 0
        %626 = vmatprep.subr.bf16.mxu0 0
        %627 = vmatpush2.bf16.msra.mxu0 0
        %628 = vmatprep.subr.bf16.mxu0 0
        %629 = vmatpush2.bf16.msra.mxu0 0
        %630 = vmatprep.subr.bf16.mxu0 0
        %631 = vmatpush2.bf16.msra.mxu0 0
        %632 = vmatprep.mubr.bf16.mxu0 0
        %633 = vmatmul.mubr.bf16.gmra.mxu0 %v591
        %v634 = vpop.f32.mrf.mxu0
        %v635 = vadd.f32 0.0, %v634
        %v636 = vpop.f32.mrf.mxu0
        %v637 = vpop.f32.mrf.mxu0
        %v638 = vadd.f32 0.0, %v637
        %v639 = vpop.f32.mrf.mxu0
        %640 = vmatprep.mubr.bf16.mxu0 0
        %641 = vmatmul.mubr.bf16.gmra.mxu0 %v594
        %v642 = vpop.f32.mrf.mxu0
        %v643 = vadd.f32 0.0, %v642
        %v644 = vpop.f32.mrf.mxu0
        %v645 = vpop.f32.mrf.mxu0
        %v646 = vadd.f32 0.0, %v645
        %v647 = vpop.f32.mrf.mxu0
        %648 = vdwg.mxu0
        %v653 = vunpack.c.l.b16 %v513
        %v654 = vunpack.c.l.b16 %v514
        %v655 = vunpack.c.l.b16 %v515
        %v656 = vunpack.c.l.b16 %v516
        %v657 = vpack.c.b16 %v654, %v653
        %v658 = vpack.c.b16 %v656, %v655
        %v660 = vsel %vm589, %v657, 0
        %v663 = vsel %vm589, %v658, 0
        %v666 = vsel %vm596, %v517, 0
        %668 = vmatprep.subr.bf16.mxu0 0
        %669 = vmatpush1.bf16.msra.mxu0 0
        %670 = vmatprep.subr.bf16.mxu0 0
        %671 = vmatpush1.bf16.msra.mxu0 0
        %672 = vmatprep.subr.bf16.mxu0 0
        %673 = vmatpush1.bf16.msra.mxu0 0
        %674 = vmatprep.subr.bf16.mxu0 0
        %675 = vmatpush1.bf16.msra.mxu0 0
        %676 = vmatprep.subr.bf16.mxu0 0
        %677 = vmatpush1.bf16.msra.mxu0 0
        %678 = vmatprep.subr.bf16.mxu0 0
        %679 = vmatpush1.bf16.msra.mxu0 0
        %680 = vmatprep.subr.bf16.mxu0 0
        %681 = vmatpush1.bf16.msra.mxu0 0
        %682 = vmatprep.subr.bf16.mxu0 0
        %683 = vmatpush1.bf16.msra.mxu0 %v666
        %684 = vmatprep.subr.bf16.mxu0 0
        %685 = vmatpush2.bf16.msra.mxu0 0
        %686 = vmatprep.subr.bf16.mxu0 0
        %687 = vmatpush2.bf16.msra.mxu0 0
        %688 = vmatprep.subr.bf16.mxu0 0
        %689 = vmatpush2.bf16.msra.mxu0 0
        %690 = vmatprep.subr.bf16.mxu0 0
        %691 = vmatpush2.bf16.msra.mxu0 0
        %692 = vmatprep.subr.bf16.mxu0 0
        %693 = vmatpush2.bf16.msra.mxu0 0
        %694 = vmatprep.subr.bf16.mxu0 0
        %695 = vmatpush2.bf16.msra.mxu0 0
        %696 = vmatprep.subr.bf16.mxu0 0
        %697 = vmatpush2.bf16.msra.mxu0 0
        %698 = vmatprep.subr.bf16.mxu0 0
        %699 = vmatpush2.bf16.msra.mxu0 0
        %700 = vmatprep.mubr.bf16.mxu0 0
        %701 = vmatmul.mubr.bf16.gmra.mxu0 %v660
        %v702 = vpop.f32.mrf.mxu0
        %v703 = vadd.f32 %v635, %v702
        %v704 = vpop.f32.mrf.mxu0
        %v705 = vpop.f32.mrf.mxu0
        %v706 = vadd.f32 %v638, %v705
        %v707 = vpop.f32.mrf.mxu0
        %708 = vmatprep.mubr.bf16.mxu0 0
        %709 = vmatmul.mubr.bf16.gmra.mxu0 %v663
        %v710 = vpop.f32.mrf.mxu0
        %v711 = vadd.f32 %v643, %v710
        %v712 = vpop.f32.mrf.mxu0
        %v713 = vpop.f32.mrf.mxu0
        %v714 = vadd.f32 %v646, %v713
        %v715 = vpop.f32.mrf.mxu0
        %716 = vdwg.mxu0
        %v717 = vld [vmem:[#allocation2] sm:$0xe]
        %v718 = vld [vmem:[#allocation2 + $0x8] sm:$0xe]
        %v719 = vld [vmem:[#allocation2 + $0x10] sm:$0xe]
        %v720 = vld [vmem:[#allocation2 + $0x18] sm:$0xe]
        %vm729 = vcmask 1042432
        %vm730 = vcmask 1046532
        %vm731 = vmor %vm729, %vm730
        %v732 = vrot.slane %v717, 5
        %v733 = vrot.slane %v732, 4
        %v734 = vrot.slane %v518, 5
        %v735 = vsel %vm731, %v733, %v734
        %v736 = vrot.slane %v718, 5
        %v737 = vrot.slane %v736, 4
        %v738 = vrot.slane %v519, 5
        %v739 = vsel %vm731, %v737, %v738
        %v740 = vrot.slane %v719, 5
        %v741 = vrot.slane %v740, 4
        %v742 = vrot.slane %v520, 5
        %v743 = vsel %vm731, %v741, %v742
        %v744 = vrot.slane %v720, 5
        %v745 = vrot.slane %v744, 4
        %v746 = vrot.slane %v521, 5
        %v747 = vsel %vm731, %v745, %v746
        %s748 = scalar_lea.vmem %s1, 4
        %v749 = vld [vmem:[%s748] sm:$0x3]
        %v750 = vunpack.c.l.b16 %v735
        %v751 = vunpack.c.l.b16 %v739
        %v752 = vunpack.c.l.b16 %v743
        %v753 = vunpack.c.l.b16 %v747
        %v754 = vpack.c.b16 %v751, %v750
        %v755 = vpack.c.b16 %v753, %v752
        %v757 = vsel %vm589, %v754, 0
        %v760 = vsel %vm589, %v755, 0
        %v763 = vsel %vm596, %v749, 0
        %765 = vmatprep.subr.bf16.mxu0 0
        %766 = vmatpush1.bf16.msra.mxu0 0
        %767 = vmatprep.subr.bf16.mxu0 0
        %768 = vmatpush1.bf16.msra.mxu0 0
        %769 = vmatprep.subr.bf16.mxu0 0
        %770 = vmatpush1.bf16.msra.mxu0 0
        %771 = vmatprep.subr.bf16.mxu0 0
        %772 = vmatpush1.bf16.msra.mxu0 0
        %773 = vmatprep.subr.bf16.mxu0 0
        %774 = vmatpush1.bf16.msra.mxu0 0
        %775 = vmatprep.subr.bf16.mxu0 0
        %776 = vmatpush1.bf16.msra.mxu0 0
        %777 = vmatprep.subr.bf16.mxu0 0
        %778 = vmatpush1.bf16.msra.mxu0 0
        %779 = vmatprep.subr.bf16.mxu0 0
        %780 = vmatpush1.bf16.msra.mxu0 %v763
        %781 = vmatprep.subr.bf16.mxu0 0
        %782 = vmatpush2.bf16.msra.mxu0 0
        %783 = vmatprep.subr.bf16.mxu0 0
        %784 = vmatpush2.bf16.msra.mxu0 0
        %785 = vmatprep.subr.bf16.mxu0 0
        %786 = vmatpush2.bf16.msra.mxu0 0
        %787 = vmatprep.subr.bf16.mxu0 0
        %788 = vmatpush2.bf16.msra.mxu0 0
        %789 = vmatprep.subr.bf16.mxu0 0
        %790 = vmatpush2.bf16.msra.mxu0 0
        %791 = vmatprep.subr.bf16.mxu0 0
        %792 = vmatpush2.bf16.msra.mxu0 0
        %793 = vmatprep.subr.bf16.mxu0 0
        %794 = vmatpush2.bf16.msra.mxu0 0
        %795 = vmatprep.subr.bf16.mxu0 0
        %796 = vmatpush2.bf16.msra.mxu0 0
        %797 = vmatprep.mubr.bf16.mxu0 0
        %798 = vmatmul.mubr.bf16.gmra.mxu0 %v757
        %v799 = vpop.f32.mrf.mxu0
        %v800 = vadd.f32 0.0, %v799
        %v801 = vpop.f32.mrf.mxu0
        %v802 = vpop.f32.mrf.mxu0
        %v803 = vadd.f32 0.0, %v802
        %v804 = vpop.f32.mrf.mxu0
        %805 = vmatprep.mubr.bf16.mxu0 0
        %806 = vmatmul.mubr.bf16.gmra.mxu0 %v760
        %v807 = vpop.f32.mrf.mxu0
        %v808 = vadd.f32 0.0, %v807
        %v809 = vpop.f32.mrf.mxu0
        %v810 = vpop.f32.mrf.mxu0
        %v811 = vadd.f32 0.0, %v810
        %v812 = vpop.f32.mrf.mxu0
        %813 = vdwg.mxu0
        %v814 = vadd.f32 %v703, %v800
        %v815 = vadd.f32 %v706, %v803
        %v816 = vadd.f32 %v711, %v808
        %v817 = vadd.f32 %v714, %v811
        %s818 = scalar_lea.vmem [#allocation2], 8
        %v819 = vld [vmem:[%s818] sm:$0xf]
        %v820 = vld [vmem:[%s818 + $0x8] sm:$0xf]
        %v821 = vld [vmem:[%s818 + $0x10] sm:$0xf]
        %v822 = vld [vmem:[%s818 + $0x18] sm:$0xf]
        %s823 = scalar_lea.vmem %s1, 6
        %v824 = vld [vmem:[%s823] sm:$0x3]
        %v829 = vunpack.c.l.b16 %v819
        %v830 = vunpack.c.l.b16 %v820
        %v831 = vunpack.c.l.b16 %v821
        %v832 = vunpack.c.l.b16 %v822
        %v833 = vpack.c.b16 %v830, %v829
        %v834 = vpack.c.b16 %v832, %v831
        %v836 = vsel %vm589, %v833, 0
        %v839 = vsel %vm589, %v834, 0
        %v842 = vsel %vm596, %v824, 0
        %844 = vmatprep.subr.bf16.mxu0 0
        %845 = vmatpush1.bf16.msra.mxu0 0
        %846 = vmatprep.subr.bf16.mxu0 0
        %847 = vmatpush1.bf16.msra.mxu0 0
        %848 = vmatprep.subr.bf16.mxu0 0
        %849 = vmatpush1.bf16.msra.mxu0 0
        %850 = vmatprep.subr.bf16.mxu0 0
        %851 = vmatpush1.bf16.msra.mxu0 0
        %852 = vmatprep.subr.bf16.mxu0 0
        %853 = vmatpush1.bf16.msra.mxu0 0
        %854 = vmatprep.subr.bf16.mxu0 0
        %855 = vmatpush1.bf16.msra.mxu0 0
        %856 = vmatprep.subr.bf16.mxu0 0
        %857 = vmatpush1.bf16.msra.mxu0 0
        %858 = vmatprep.subr.bf16.mxu0 0
        %859 = vmatpush1.bf16.msra.mxu0 %v842
        %860 = vmatprep.subr.bf16.mxu0 0
        %861 = vmatpush2.bf16.msra.mxu0 0
        %862 = vmatprep.subr.bf16.mxu0 0
        %863 = vmatpush2.bf16.msra.mxu0 0
        %864 = vmatprep.subr.bf16.mxu0 0
        %865 = vmatpush2.bf16.msra.mxu0 0
        %866 = vmatprep.subr.bf16.mxu0 0
        %867 = vmatpush2.bf16.msra.mxu0 0
        %868 = vmatprep.subr.bf16.mxu0 0
        %869 = vmatpush2.bf16.msra.mxu0 0
        %870 = vmatprep.subr.bf16.mxu0 0
        %871 = vmatpush2.bf16.msra.mxu0 0
        %872 = vmatprep.subr.bf16.mxu0 0
        %873 = vmatpush2.bf16.msra.mxu0 0
        %874 = vmatprep.subr.bf16.mxu0 0
        %875 = vmatpush2.bf16.msra.mxu0 0
        %876 = vmatprep.mubr.bf16.mxu0 0
        %877 = vmatmul.mubr.bf16.gmra.mxu0 %v836
        %v878 = vpop.f32.mrf.mxu0
        %v879 = vadd.f32 0.0, %v878
        %v880 = vpop.f32.mrf.mxu0
        %v881 = vpop.f32.mrf.mxu0
        %v882 = vadd.f32 0.0, %v881
        %v883 = vpop.f32.mrf.mxu0
        %884 = vmatprep.mubr.bf16.mxu0 0
        %885 = vmatmul.mubr.bf16.gmra.mxu0 %v839
        %v886 = vpop.f32.mrf.mxu0
        %v887 = vadd.f32 0.0, %v886
        %v888 = vpop.f32.mrf.mxu0
        %v889 = vpop.f32.mrf.mxu0
        %v890 = vadd.f32 0.0, %v889
        %v891 = vpop.f32.mrf.mxu0
        %892 = vdwg.mxu0
        %v893 = vadd.f32 %v814, %v879
        %v894 = vadd.f32 %v815, %v882
        %v895 = vadd.f32 %v816, %v887
        %v896 = vadd.f32 %v817, %v890
        %v897 = vld [vmem:[%s818] sm:$0xf]
        %v898 = vld [vmem:[%s818 + $0x4] sm:$0x1]
        %v899 = vld [vmem:[%s818 + $0x8] sm:$0xf]
        %v900 = vld [vmem:[%s818 + $0xc] sm:$0x1]
        %v901 = vld [vmem:[%s818 + $0x10] sm:$0xf]
        %v902 = vld [vmem:[%s818 + $0x14] sm:$0x1]
        %v903 = vld [vmem:[%s818 + $0x18] sm:$0xf]
        %v904 = vld [vmem:[%s818 + $0x1c] sm:$0x1]
        %v906 = vshrl.u32 %v897, 16
        %v908 = vrot.slane %v906, 4
        %v909 = vshll.u32 %v897, 16
        %v911 = vrot.slane %v909, 5
        %v912 = vor.u32 %v908, %v911
        %v913 = vrot.slane %v912, 4
        %v915 = vshll.u32 %v898, 16
        %v917 = vrot.slane %v915, 5
        %v918 = vsel %vm524, %v913, %v917
        %v920 = vshrl.u32 %v899, 16
        %v922 = vrot.slane %v920, 4
        %v923 = vshll.u32 %v899, 16
        %v925 = vrot.slane %v923, 5
        %v926 = vor.u32 %v922, %v925
        %v927 = vrot.slane %v926, 4
        %v929 = vshll.u32 %v900, 16
        %v931 = vrot.slane %v929, 5
        %v932 = vsel %vm524, %v927, %v931
        %v934 = vshrl.u32 %v901, 16
        %v936 = vrot.slane %v934, 4
        %v937 = vshll.u32 %v901, 16
        %v939 = vrot.slane %v937, 5
        %v940 = vor.u32 %v936, %v939
        %v941 = vrot.slane %v940, 4
        %v943 = vshll.u32 %v902, 16
        %v945 = vrot.slane %v943, 5
        %v946 = vsel %vm524, %v941, %v945
        %v948 = vshrl.u32 %v903, 16
        %v950 = vrot.slane %v948, 4
        %v951 = vshll.u32 %v903, 16
        %v953 = vrot.slane %v951, 5
        %v954 = vor.u32 %v950, %v953
        %v955 = vrot.slane %v954, 4
        %v957 = vshll.u32 %v904, 16
        %v959 = vrot.slane %v957, 5
        %v960 = vsel %vm524, %v955, %v959
        %s961 = scalar_lea.vmem %s1, 8
        %v962 = vld [vmem:[%s961] sm:$0x3]
        %v963 = vunpack.c.l.b16 %v918
        %v964 = vunpack.c.l.b16 %v932
        %v965 = vunpack.c.l.b16 %v946
        %v966 = vunpack.c.l.b16 %v960
        %v967 = vpack.c.b16 %v964, %v963
        %v968 = vpack.c.b16 %v966, %v965
        %v970 = vsel %vm589, %v967, 0
        %v973 = vsel %vm589, %v968, 0
        %v976 = vsel %vm596, %v962, 0
        %978 = vmatprep.subr.bf16.mxu0 0
        %979 = vmatpush1.bf16.msra.mxu0 0
        %980 = vmatprep.subr.bf16.mxu0 0
        %981 = vmatpush1.bf16.msra.mxu0 0
        %982 = vmatprep.subr.bf16.mxu0 0
        %983 = vmatpush1.bf16.msra.mxu0 0
        %984 = vmatprep.subr.bf16.mxu0 0
        %985 = vmatpush1.bf16.msra.mxu0 0
        %986 = vmatprep.subr.bf16.mxu0 0
        %987 = vmatpush1.bf16.msra.mxu0 0
        %988 = vmatprep.subr.bf16.mxu0 0
        %989 = vmatpush1.bf16.msra.mxu0 0
        %990 = vmatprep.subr.bf16.mxu0 0
        %991 = vmatpush1.bf16.msra.mxu0 0
        %992 = vmatprep.subr.bf16.mxu0 0
        %993 = vmatpush1.bf16.msra.mxu0 %v976
        %994 = vmatprep.subr.bf16.mxu0 0
        %995 = vmatpush2.bf16.msra.mxu0 0
        %996 = vmatprep.subr.bf16.mxu0 0
        %997 = vmatpush2.bf16.msra.mxu0 0
        %998 = vmatprep.subr.bf16.mxu0 0
        %999 = vmatpush2.bf16.msra.mxu0 0
        %1000 = vmatprep.subr.bf16.mxu0 0
        %1001 = vmatpush2.bf16.msra.mxu0 0
        %1002 = vmatprep.subr.bf16.mxu0 0
        %1003 = vmatpush2.bf16.msra.mxu0 0
        %1004 = vmatprep.subr.bf16.mxu0 0
        %1005 = vmatpush2.bf16.msra.mxu0 0
        %1006 = vmatprep.subr.bf16.mxu0 0
        %1007 = vmatpush2.bf16.msra.mxu0 0
        %1008 = vmatprep.subr.bf16.mxu0 0
        %1009 = vmatpush2.bf16.msra.mxu0 0
        %1010 = vmatprep.mubr.bf16.mxu0 0
        %1011 = vmatmul.mubr.bf16.gmra.mxu0 %v970
        %v1012 = vpop.f32.mrf.mxu0
        %v1013 = vadd.f32 0.0, %v1012
        %v1014 = vpop.f32.mrf.mxu0
        %v1015 = vpop.f32.mrf.mxu0
        %v1016 = vadd.f32 0.0, %v1015
        %v1017 = vpop.f32.mrf.mxu0
        %1018 = vmatprep.mubr.bf16.mxu0 0
        %1019 = vmatmul.mubr.bf16.gmra.mxu0 %v973
        %v1020 = vpop.f32.mrf.mxu0
        %v1021 = vadd.f32 0.0, %v1020
        %v1022 = vpop.f32.mrf.mxu0
        %v1023 = vpop.f32.mrf.mxu0
        %v1024 = vadd.f32 0.0, %v1023
        %v1025 = vpop.f32.mrf.mxu0
        %1026 = vdwg.mxu0
        %v1027 = vadd.f32 %v893, %v1013
        %v1028 = vadd.f32 %v894, %v1016
        %v1029 = vadd.f32 %v895, %v1021
        %v1030 = vadd.f32 %v896, %v1024
        %v1031 = vld [vmem:[%s818] sm:$0xe]
        %v1032 = vld [vmem:[%s818 + $0x8] sm:$0xe]
        %v1033 = vld [vmem:[%s818 + $0x10] sm:$0xe]
        %v1034 = vld [vmem:[%s818 + $0x18] sm:$0xe]
        %v1043 = vrot.slane %v1031, 5
        %v1044 = vrot.slane %v1043, 4
        %v1045 = vrot.slane %v898, 5
        %v1046 = vsel %vm731, %v1044, %v1045
        %v1047 = vrot.slane %v1032, 5
        %v1048 = vrot.slane %v1047, 4
        %v1049 = vrot.slane %v900, 5
        %v1050 = vsel %vm731, %v1048, %v1049
        %v1051 = vrot.slane %v1033, 5
        %v1052 = vrot.slane %v1051, 4
        %v1053 = vrot.slane %v902, 5
        %v1054 = vsel %vm731, %v1052, %v1053
        %v1055 = vrot.slane %v1034, 5
        %v1056 = vrot.slane %v1055, 4
        %v1057 = vrot.slane %v904, 5
        %v1058 = vsel %vm731, %v1056, %v1057
        %s1059 = scalar_lea.vmem %s1, 10
        %v1060 = vld [vmem:[%s1059] sm:$0x3]
        %v1061 = vunpack.c.l.b16 %v1046
        %v1062 = vunpack.c.l.b16 %v1050
        %v1063 = vunpack.c.l.b16 %v1054
        %v1064 = vunpack.c.l.b16 %v1058
        %v1065 = vpack.c.b16 %v1062, %v1061
        %v1066 = vpack.c.b16 %v1064, %v1063
        %v1068 = vsel %vm589, %v1065, 0
        %v1071 = vsel %vm589, %v1066, 0
        %v1074 = vsel %vm596, %v1060, 0
        %1076 = vmatprep.subr.bf16.mxu0 0
        %1077 = vmatpush1.bf16.msra.mxu0 0
        %1078 = vmatprep.subr.bf16.mxu0 0
        %1079 = vmatpush1.bf16.msra.mxu0 0
        %1080 = vmatprep.subr.bf16.mxu0 0
        %1081 = vmatpush1.bf16.msra.mxu0 0
        %1082 = vmatprep.subr.bf16.mxu0 0
        %1083 = vmatpush1.bf16.msra.mxu0 0
        %1084 = vmatprep.subr.bf16.mxu0 0
        %1085 = vmatpush1.bf16.msra.mxu0 0
        %1086 = vmatprep.subr.bf16.mxu0 0
        %1087 = vmatpush1.bf16.msra.mxu0 0
        %1088 = vmatprep.subr.bf16.mxu0 0
        %1089 = vmatpush1.bf16.msra.mxu0 0
        %1090 = vmatprep.subr.bf16.mxu0 0
        %1091 = vmatpush1.bf16.msra.mxu0 %v1074
        %1092 = vmatprep.subr.bf16.mxu0 0
        %1093 = vmatpush2.bf16.msra.mxu0 0
        %1094 = vmatprep.subr.bf16.mxu0 0
        %1095 = vmatpush2.bf16.msra.mxu0 0
        %1096 = vmatprep.subr.bf16.mxu0 0
        %1097 = vmatpush2.bf16.msra.mxu0 0
        %1098 = vmatprep.subr.bf16.mxu0 0
        %1099 = vmatpush2.bf16.msra.mxu0 0
        %1100 = vmatprep.subr.bf16.mxu0 0
        %1101 = vmatpush2.bf16.msra.mxu0 0
        %1102 = vmatprep.subr.bf16.mxu0 0
        %1103 = vmatpush2.bf16.msra.mxu0 0
        %1104 = vmatprep.subr.bf16.mxu0 0
        %1105 = vmatpush2.bf16.msra.mxu0 0
        %1106 = vmatprep.subr.bf16.mxu0 0
        %1107 = vmatpush2.bf16.msra.mxu0 0
        %1108 = vmatprep.mubr.bf16.mxu0 0
        %1109 = vmatmul.mubr.bf16.gmra.mxu0 %v1068
        %v1110 = vpop.f32.mrf.mxu0
        %v1111 = vadd.f32 0.0, %v1110
        %v1112 = vpop.f32.mrf.mxu0
        %v1113 = vpop.f32.mrf.mxu0
        %v1114 = vadd.f32 0.0, %v1113
        %v1115 = vpop.f32.mrf.mxu0
        %1116 = vmatprep.mubr.bf16.mxu0 0
        %1117 = vmatmul.mubr.bf16.gmra.mxu0 %v1071
        %v1118 = vpop.f32.mrf.mxu0
        %v1119 = vadd.f32 0.0, %v1118
        %v1120 = vpop.f32.mrf.mxu0
        %v1121 = vpop.f32.mrf.mxu0
        %v1122 = vadd.f32 0.0, %v1121
        %v1123 = vpop.f32.mrf.mxu0
        %1124 = vdwg.mxu0
        %v1125 = vadd.f32 %v1027, %v1111
        %v1126 = vadd.f32 %v1028, %v1114
        %v1127 = vadd.f32 %v1029, %v1119
        %v1128 = vadd.f32 %v1030, %v1122
        %s1129 = scalar_lea.vmem [#allocation2], 16
        %v1130 = vld [vmem:[%s1129] sm:$0xf]
        %v1131 = vld [vmem:[%s1129 + $0x8] sm:$0xf]
        %v1132 = vld [vmem:[%s1129 + $0x10] sm:$0xf]
        %v1133 = vld [vmem:[%s1129 + $0x18] sm:$0xf]
        %s1134 = scalar_lea.vmem %s1, 12
        %v1135 = vld [vmem:[%s1134] sm:$0x3]
        %v1140 = vunpack.c.l.b16 %v1130
        %v1141 = vunpack.c.l.b16 %v1131
        %v1142 = vunpack.c.l.b16 %v1132
        %v1143 = vunpack.c.l.b16 %v1133
        %v1144 = vpack.c.b16 %v1141, %v1140
        %v1145 = vpack.c.b16 %v1143, %v1142
        %v1147 = vsel %vm589, %v1144, 0
        %v1150 = vsel %vm589, %v1145, 0
        %v1153 = vsel %vm596, %v1135, 0
        %1155 = vmatprep.subr.bf16.mxu0 0
        %1156 = vmatpush1.bf16.msra.mxu0 0
        %1157 = vmatprep.subr.bf16.mxu0 0
        %1158 = vmatpush1.bf16.msra.mxu0 0
        %1159 = vmatprep.subr.bf16.mxu0 0
        %1160 = vmatpush1.bf16.msra.mxu0 0
        %1161 = vmatprep.subr.bf16.mxu0 0
        %1162 = vmatpush1.bf16.msra.mxu0 0
        %1163 = vmatprep.subr.bf16.mxu0 0
        %1164 = vmatpush1.bf16.msra.mxu0 0
        %1165 = vmatprep.subr.bf16.mxu0 0
        %1166 = vmatpush1.bf16.msra.mxu0 0
        %1167 = vmatprep.subr.bf16.mxu0 0
        %1168 = vmatpush1.bf16.msra.mxu0 0
        %1169 = vmatprep.subr.bf16.mxu0 0
        %1170 = vmatpush1.bf16.msra.mxu0 %v1153
        %1171 = vmatprep.subr.bf16.mxu0 0
        %1172 = vmatpush2.bf16.msra.mxu0 0
        %1173 = vmatprep.subr.bf16.mxu0 0
        %1174 = vmatpush2.bf16.msra.mxu0 0
        %1175 = vmatprep.subr.bf16.mxu0 0
        %1176 = vmatpush2.bf16.msra.mxu0 0
        %1177 = vmatprep.subr.bf16.mxu0 0
        %1178 = vmatpush2.bf16.msra.mxu0 0
        %1179 = vmatprep.subr.bf16.mxu0 0
        %1180 = vmatpush2.bf16.msra.mxu0 0
        %1181 = vmatprep.subr.bf16.mxu0 0
        %1182 = vmatpush2.bf16.msra.mxu0 0
        %1183 = vmatprep.subr.bf16.mxu0 0
        %1184 = vmatpush2.bf16.msra.mxu0 0
        %1185 = vmatprep.subr.bf16.mxu0 0
        %1186 = vmatpush2.bf16.msra.mxu0 0
        %1187 = vmatprep.mubr.bf16.mxu0 0
        %1188 = vmatmul.mubr.bf16.gmra.mxu0 %v1147
        %v1189 = vpop.f32.mrf.mxu0
        %v1190 = vadd.f32 0.0, %v1189
        %v1191 = vpop.f32.mrf.mxu0
        %v1192 = vpop.f32.mrf.mxu0
        %v1193 = vadd.f32 0.0, %v1192
        %v1194 = vpop.f32.mrf.mxu0
        %1195 = vmatprep.mubr.bf16.mxu0 0
        %1196 = vmatmul.mubr.bf16.gmra.mxu0 %v1150
        %v1197 = vpop.f32.mrf.mxu0
        %v1198 = vadd.f32 0.0, %v1197
        %v1199 = vpop.f32.mrf.mxu0
        %v1200 = vpop.f32.mrf.mxu0
        %v1201 = vadd.f32 0.0, %v1200
        %v1202 = vpop.f32.mrf.mxu0
        %1203 = vdwg.mxu0
        %v1204 = vadd.f32 %v1125, %v1190
        %v1205 = vadd.f32 %v1126, %v1193
        %v1206 = vadd.f32 %v1127, %v1198
        %v1207 = vadd.f32 %v1128, %v1201
        %v1208 = vld [vmem:[%s1129] sm:$0xf]
        %v1209 = vld [vmem:[%s1129 + $0x4] sm:$0x1]
        %v1210 = vld [vmem:[%s1129 + $0x8] sm:$0xf]
        %v1211 = vld [vmem:[%s1129 + $0xc] sm:$0x1]
        %v1212 = vld [vmem:[%s1129 + $0x10] sm:$0xf]
        %v1213 = vld [vmem:[%s1129 + $0x14] sm:$0x1]
        %v1214 = vld [vmem:[%s1129 + $0x18] sm:$0xf]
        %v1215 = vld [vmem:[%s1129 + $0x1c] sm:$0x1]
        %v1217 = vshrl.u32 %v1208, 16
        %v1219 = vrot.slane %v1217, 4
        %v1220 = vshll.u32 %v1208, 16
        %v1222 = vrot.slane %v1220, 5
        %v1223 = vor.u32 %v1219, %v1222
        %v1224 = vrot.slane %v1223, 4
        %v1226 = vshll.u32 %v1209, 16
        %v1228 = vrot.slane %v1226, 5
        %v1229 = vsel %vm524, %v1224, %v1228
        %v1231 = vshrl.u32 %v1210, 16
        %v1233 = vrot.slane %v1231, 4
        %v1234 = vshll.u32 %v1210, 16
        %v1236 = vrot.slane %v1234, 5
        %v1237 = vor.u32 %v1233, %v1236
        %v1238 = vrot.slane %v1237, 4
        %v1240 = vshll.u32 %v1211, 16
        %v1242 = vrot.slane %v1240, 5
        %v1243 = vsel %vm524, %v1238, %v1242
        %v1245 = vshrl.u32 %v1212, 16
        %v1247 = vrot.slane %v1245, 4
        %v1248 = vshll.u32 %v1212, 16
        %v1250 = vrot.slane %v1248, 5
        %v1251 = vor.u32 %v1247, %v1250
        %v1252 = vrot.slane %v1251, 4
        %v1254 = vshll.u32 %v1213, 16
        %v1256 = vrot.slane %v1254, 5
        %v1257 = vsel %vm524, %v1252, %v1256
        %v1259 = vshrl.u32 %v1214, 16
        %v1261 = vrot.slane %v1259, 4
        %v1262 = vshll.u32 %v1214, 16
        %v1264 = vrot.slane %v1262, 5
        %v1265 = vor.u32 %v1261, %v1264
        %v1266 = vrot.slane %v1265, 4
        %v1268 = vshll.u32 %v1215, 16
        %v1270 = vrot.slane %v1268, 5
        %v1271 = vsel %vm524, %v1266, %v1270
        %s1272 = scalar_lea.vmem %s1, 14
        %v1273 = vld [vmem:[%s1272] sm:$0x3]
        %v1274 = vunpack.c.l.b16 %v1229
        %v1275 = vunpack.c.l.b16 %v1243
        %v1276 = vunpack.c.l.b16 %v1257
        %v1277 = vunpack.c.l.b16 %v1271
        %v1278 = vpack.c.b16 %v1275, %v1274
        %v1279 = vpack.c.b16 %v1277, %v1276
        %v1281 = vsel %vm589, %v1278, 0
        %v1284 = vsel %vm589, %v1279, 0
        %v1287 = vsel %vm596, %v1273, 0
        %1289 = vmatprep.subr.bf16.mxu0 0
        %1290 = vmatpush1.bf16.msra.mxu0 0
        %1291 = vmatprep.subr.bf16.mxu0 0
        %1292 = vmatpush1.bf16.msra.mxu0 0
        %1293 = vmatprep.subr.bf16.mxu0 0
        %1294 = vmatpush1.bf16.msra.mxu0 0
        %1295 = vmatprep.subr.bf16.mxu0 0
        %1296 = vmatpush1.bf16.msra.mxu0 0
        %1297 = vmatprep.subr.bf16.mxu0 0
        %1298 = vmatpush1.bf16.msra.mxu0 0
        %1299 = vmatprep.subr.bf16.mxu0 0
        %1300 = vmatpush1.bf16.msra.mxu0 0
        %1301 = vmatprep.subr.bf16.mxu0 0
        %1302 = vmatpush1.bf16.msra.mxu0 0
        %1303 = vmatprep.subr.bf16.mxu0 0
        %1304 = vmatpush1.bf16.msra.mxu0 %v1287
        %1305 = vmatprep.subr.bf16.mxu0 0
        %1306 = vmatpush2.bf16.msra.mxu0 0
        %1307 = vmatprep.subr.bf16.mxu0 0
        %1308 = vmatpush2.bf16.msra.mxu0 0
        %1309 = vmatprep.subr.bf16.mxu0 0
        %1310 = vmatpush2.bf16.msra.mxu0 0
        %1311 = vmatprep.subr.bf16.mxu0 0
        %1312 = vmatpush2.bf16.msra.mxu0 0
        %1313 = vmatprep.subr.bf16.mxu0 0
        %1314 = vmatpush2.bf16.msra.mxu0 0
        %1315 = vmatprep.subr.bf16.mxu0 0
        %1316 = vmatpush2.bf16.msra.mxu0 0
        %1317 = vmatprep.subr.bf16.mxu0 0
        %1318 = vmatpush2.bf16.msra.mxu0 0
        %1319 = vmatprep.subr.bf16.mxu0 0
        %1320 = vmatpush2.bf16.msra.mxu0 0
        %1321 = vmatprep.mubr.bf16.mxu0 0
        %1322 = vmatmul.mubr.bf16.gmra.mxu0 %v1281
        %v1323 = vpop.f32.mrf.mxu0
        %v1324 = vadd.f32 0.0, %v1323
        %v1325 = vpop.f32.mrf.mxu0
        %v1326 = vpop.f32.mrf.mxu0
        %v1327 = vadd.f32 0.0, %v1326
        %v1328 = vpop.f32.mrf.mxu0
        %1329 = vmatprep.mubr.bf16.mxu0 0
        %1330 = vmatmul.mubr.bf16.gmra.mxu0 %v1284
        %v1331 = vpop.f32.mrf.mxu0
        %v1332 = vadd.f32 0.0, %v1331
        %v1333 = vpop.f32.mrf.mxu0
        %v1334 = vpop.f32.mrf.mxu0
        %v1335 = vadd.f32 0.0, %v1334
        %v1336 = vpop.f32.mrf.mxu0
        %1337 = vdwg.mxu0
        %v1338 = vadd.f32 %v1204, %v1324
        %v1339 = vadd.f32 %v1205, %v1327
        %v1340 = vadd.f32 %v1206, %v1332
        %v1341 = vadd.f32 %v1207, %v1335
        %v1342 = vld [vmem:[%s1129] sm:$0xe]
        %v1343 = vld [vmem:[%s1129 + $0x8] sm:$0xe]
        %v1344 = vld [vmem:[%s1129 + $0x10] sm:$0xe]
        %v1345 = vld [vmem:[%s1129 + $0x18] sm:$0xe]
        %v1354 = vrot.slane %v1342, 5
        %v1355 = vrot.slane %v1354, 4
        %v1356 = vrot.slane %v1209, 5
        %v1357 = vsel %vm731, %v1355, %v1356
        %v1358 = vrot.slane %v1343, 5
        %v1359 = vrot.slane %v1358, 4
        %v1360 = vrot.slane %v1211, 5
        %v1361 = vsel %vm731, %v1359, %v1360
        %v1362 = vrot.slane %v1344, 5
        %v1363 = vrot.slane %v1362, 4
        %v1364 = vrot.slane %v1213, 5
        %v1365 = vsel %vm731, %v1363, %v1364
        %v1366 = vrot.slane %v1345, 5
        %v1367 = vrot.slane %v1366, 4
        %v1368 = vrot.slane %v1215, 5
        %v1369 = vsel %vm731, %v1367, %v1368
        %s1370 = scalar_lea.vmem %s1, 16
        %v1371 = vld [vmem:[%s1370] sm:$0x3]
        %v1372 = vunpack.c.l.b16 %v1357
        %v1373 = vunpack.c.l.b16 %v1361
        %v1374 = vunpack.c.l.b16 %v1365
        %v1375 = vunpack.c.l.b16 %v1369
        %v1376 = vpack.c.b16 %v1373, %v1372
        %v1377 = vpack.c.b16 %v1375, %v1374
        %v1379 = vsel %vm589, %v1376, 0
        %v1382 = vsel %vm589, %v1377, 0
        %v1385 = vsel %vm596, %v1371, 0
        %1387 = vmatprep.subr.bf16.mxu0 0
        %1388 = vmatpush1.bf16.msra.mxu0 0
        %1389 = vmatprep.subr.bf16.mxu0 0
        %1390 = vmatpush1.bf16.msra.mxu0 0
        %1391 = vmatprep.subr.bf16.mxu0 0
        %1392 = vmatpush1.bf16.msra.mxu0 0
        %1393 = vmatprep.subr.bf16.mxu0 0
        %1394 = vmatpush1.bf16.msra.mxu0 0
        %1395 = vmatprep.subr.bf16.mxu0 0
        %1396 = vmatpush1.bf16.msra.mxu0 0
        %1397 = vmatprep.subr.bf16.mxu0 0
        %1398 = vmatpush1.bf16.msra.mxu0 0
        %1399 = vmatprep.subr.bf16.mxu0 0
        %1400 = vmatpush1.bf16.msra.mxu0 0
        %1401 = vmatprep.subr.bf16.mxu0 0
        %1402 = vmatpush1.bf16.msra.mxu0 %v1385
        %1403 = vmatprep.subr.bf16.mxu0 0
        %1404 = vmatpush2.bf16.msra.mxu0 0
        %1405 = vmatprep.subr.bf16.mxu0 0
        %1406 = vmatpush2.bf16.msra.mxu0 0
        %1407 = vmatprep.subr.bf16.mxu0 0
        %1408 = vmatpush2.bf16.msra.mxu0 0
        %1409 = vmatprep.subr.bf16.mxu0 0
        %1410 = vmatpush2.bf16.msra.mxu0 0
        %1411 = vmatprep.subr.bf16.mxu0 0
        %1412 = vmatpush2.bf16.msra.mxu0 0
        %1413 = vmatprep.subr.bf16.mxu0 0
        %1414 = vmatpush2.bf16.msra.mxu0 0
        %1415 = vmatprep.subr.bf16.mxu0 0
        %1416 = vmatpush2.bf16.msra.mxu0 0
        %1417 = vmatprep.subr.bf16.mxu0 0
        %1418 = vmatpush2.bf16.msra.mxu0 0
        %1419 = vmatprep.mubr.bf16.mxu0 0
        %1420 = vmatmul.mubr.bf16.gmra.mxu0 %v1379
        %v1421 = vpop.f32.mrf.mxu0
        %v1422 = vadd.f32 0.0, %v1421
        %v1423 = vpop.f32.mrf.mxu0
        %v1424 = vpop.f32.mrf.mxu0
        %v1425 = vadd.f32 0.0, %v1424
        %v1426 = vpop.f32.mrf.mxu0
        %1427 = vmatprep.mubr.bf16.mxu0 0
        %1428 = vmatmul.mubr.bf16.gmra.mxu0 %v1382
        %v1429 = vpop.f32.mrf.mxu0
        %v1430 = vadd.f32 0.0, %v1429
        %v1431 = vpop.f32.mrf.mxu0
        %v1432 = vpop.f32.mrf.mxu0
        %v1433 = vadd.f32 0.0, %v1432
        %v1434 = vpop.f32.mrf.mxu0
        %1435 = vdwg.mxu0
        %v1436 = vadd.f32 %v1338, %v1422
        %v1437 = vadd.f32 %v1339, %v1425
        %v1438 = vadd.f32 %v1340, %v1430
        %v1439 = vadd.f32 %v1341, %v1433
        %v1440 = vld [vmem:[%s2] sm:$0x1]
        %v1442 = vlaneseq
        %v1443 = vshrl.u32 %v1442, 7
        %v1444 = vsub.s32 0, %v1443
        %v1445 = vrot.slane %v1440, %v1444
        %v1447 = vmul.f32 %v1436, %v1445
        %v1448 = vmul.f32 %v1437, %v1445
        %v1449 = vmul.f32 %v1438, %v1445
        %v1450 = vmul.f32 %v1439, %v1445
        %v1451 = vld [vmem:[%s3] sm:$0x1]
        %v1453 = vlaneseq
        %v1454 = vshrl.u32 %v1453, 7
        %v1455 = vsub.s32 0, %v1454
        %v1456 = vrot.slane %v1451, %v1455
        %v1458 = vadd.f32 %v1447, %v1456
        %v1459 = vadd.f32 %v1448, %v1456
        %v1460 = vadd.f32 %v1449, %v1456
        %v1461 = vadd.f32 %v1450, %v1456
        %v1462 = vmax.f32 %v1458, 0.0
        %v1463 = vmax.f32 %v1459, 0.0
        %v1464 = vmax.f32 %v1460, 0.0
        %v1465 = vmax.f32 %v1461, 0.0
        %v1466 = vpack.c.bf16 %v1463, %v1462
        %v1467 = vpack.c.bf16 %v1465, %v1464
        %v1470 = vunpack.c.l.b16 %v1466
        %v1471 = vunpack.c.h.b16 %v1466
        %v1472 = vunpack.c.l.b16 %v1467
        %v1473 = vunpack.c.h.b16 %v1467
        %v1474 = vpack.c.b16 %v1470, %v1470
        %v1475 = vpack.c.b16 %v1471, %v1471
        %v1476 = vpack.c.b16 %v1472, %v1472
        %v1477 = vpack.c.b16 %v1473, %v1473
        %vm1478 = vcmask 57344
        %vm1479 = vmand %vm1478, %vm375
        %v1480 = vld [vmem:[#allocation3] sm:$0x1]
        %v1481 = vsel %vm1479, 0, %v1480
        %1482 = vst [vmem:[#allocation3] sm:$0x1] %v1481
        %v1483 = vld [vmem:[#allocation3 + $0x8] sm:$0x1]
        %v1484 = vsel %vm1479, 0, %v1483
        %1485 = vst [vmem:[#allocation3 + $0x8] sm:$0x1] %v1484
        %v1486 = vld [vmem:[#allocation3 + $0x10] sm:$0x1]
        %v1487 = vsel %vm1479, 0, %v1486
        %1488 = vst [vmem:[#allocation3 + $0x10] sm:$0x1] %v1487
        %v1489 = vld [vmem:[#allocation3 + $0x18] sm:$0x1]
        %v1490 = vsel %vm1479, 0, %v1489
        %1491 = vst [vmem:[#allocation3 + $0x18] sm:$0x1] %v1490
        %vm1492 = vmand %vm1478, %vm395
        %v1493 = vld [vmem:[#allocation3 + $0x4] sm:$0x1]
        %v1494 = vsel %vm1492, 0, %v1493
        %1495 = vst [vmem:[#allocation3 + $0x4] sm:$0x1] %v1494
        %v1496 = vld [vmem:[#allocation3 + $0xc] sm:$0x1]
        %v1497 = vsel %vm1492, 0, %v1496
        %1498 = vst [vmem:[#allocation3 + $0xc] sm:$0x1] %v1497
        %v1499 = vld [vmem:[#allocation3 + $0x14] sm:$0x1]
        %v1500 = vsel %vm1492, 0, %v1499
        %1501 = vst [vmem:[#allocation3 + $0x14] sm:$0x1] %v1500
        %v1502 = vld [vmem:[#allocation3 + $0x1c] sm:$0x1]
        %v1503 = vsel %vm1492, 0, %v1502
        %1504 = vst [vmem:[#allocation3 + $0x1c] sm:$0x1] %v1503
        %v1506 = vshrl.u32 %v1474, 16
        %v1508 = vrot.slane %v1506, 7
        %v1509 = vshll.u32 %v1474, 16
        %v1511 = vor.u32 %v1508, %v1509
        %v1512 = vrot.slane %v1508, 4
        %v1514 = vshrl.u32 %v1475, 16
        %v1516 = vrot.slane %v1514, 7
        %v1517 = vshll.u32 %v1475, 16
        %v1519 = vor.u32 %v1516, %v1517
        %v1520 = vrot.slane %v1516, 4
        %v1522 = vshrl.u32 %v1476, 16
        %v1524 = vrot.slane %v1522, 7
        %v1525 = vshll.u32 %v1476, 16
        %v1527 = vor.u32 %v1524, %v1525
        %v1528 = vrot.slane %v1524, 4
        %v1530 = vshrl.u32 %v1477, 16
        %v1532 = vrot.slane %v1530, 7
        %v1533 = vshll.u32 %v1477, 16
        %v1535 = vor.u32 %v1532, %v1533
        %v1536 = vrot.slane %v1532, 4
        %vm1545 = vcmask 60416
        %vm1546 = vmand %vm1545, %vm395
        %v1547 = vld [vmem:[#allocation3] sm:$0xf]
        %v1548 = vsel %vm1546, %v1511, %v1547
        %1549 = vst [vmem:[#allocation3] sm:$0xf] %v1548
        %v1550 = vld [vmem:[#allocation3 + $0x4] sm:$0x1]
        %v1551 = vsel %vm1479, %v1512, %v1550
        %1552 = vst [vmem:[#allocation3 + $0x4] sm:$0x1] %v1551
        %v1553 = vld [vmem:[#allocation3 + $0x8] sm:$0xf]
        %v1554 = vsel %vm1546, %v1519, %v1553
        %1555 = vst [vmem:[#allocation3 + $0x8] sm:$0xf] %v1554
        %v1556 = vld [vmem:[#allocation3 + $0xc] sm:$0x1]
        %v1557 = vsel %vm1479, %v1520, %v1556
        %1558 = vst [vmem:[#allocation3 + $0xc] sm:$0x1] %v1557
        %v1559 = vld [vmem:[#allocation3 + $0x10] sm:$0xf]
        %v1560 = vsel %vm1546, %v1527, %v1559
        %1561 = vst [vmem:[#allocation3 + $0x10] sm:$0xf] %v1560
        %v1562 = vld [vmem:[#allocation3 + $0x14] sm:$0x1]
        %v1563 = vsel %vm1479, %v1528, %v1562
        %1564 = vst [vmem:[#allocation3 + $0x14] sm:$0x1] %v1563
        %v1565 = vld [vmem:[#allocation3 + $0x18] sm:$0xf]
        %v1566 = vsel %vm1546, %v1535, %v1565
        %1567 = vst [vmem:[#allocation3 + $0x18] sm:$0xf] %v1566
        %v1568 = vld [vmem:[#allocation3 + $0x1c] sm:$0x1]
        %v1569 = vsel %vm1479, %v1536, %v1568
        %1570 = vst [vmem:[#allocation3 + $0x1c] sm:$0x1] %v1569
        %p1571 = scmp.eq.s32.totalorder %s26, 0
        // Predicated region
        $region49: #{tpu_custom_call.1} parent=47 // pred_check
          %p1572 = pneg %p1571
        $region50: #{tpu_custom_call.1} parent=47 // pred_check_branch
          %1574 = sbr.rel (%p1572) target = $region52
        $region51: #{tpu_custom_call.1} parent=47 // pred_region
          %vm1575 = vcmask 60416
          %1576 = vst.msk [vmem:[#allocation3] sm:$0xf] %vm1575, 0
          %vm1577 = vcmask 57344
          %1578 = vst.msk [vmem:[#allocation3 + $0x4] sm:$0x1] %vm1577, 0
        $region52: #{tpu_custom_call.1} parent=47 // pred_fallthru
          _
        %p1579 = scmp.eq.s32.totalorder %s26, 3
        // Predicated region
        $region53: #{tpu_custom_call.1} parent=47 // pred_check
          %p1580 = pneg %p1579
        $region54: #{tpu_custom_call.1} parent=47 // pred_check_branch
          %1582 = sbr.rel (%p1580) target = $region56
        $region55: #{tpu_custom_call.1} parent=47 // pred_region
          %s1583 = scalar_lea.vmem [#allocation3], 24
          %vm1584 = vcmask 60416
          %1585 = vst.msk [vmem:[%s1583] sm:$0xf] %vm1584, 0
          %vm1586 = vcmask 57344
          %1587 = vst.msk [vmem:[%s1583 + $0x4] sm:$0x1] %vm1586, 0
        $region56: #{tpu_custom_call.1} parent=47 // pred_fallthru
          _
        %v1588 = vld [vmem:[#allocation3] sm:$0xf]
        %v1589 = vld [vmem:[#allocation3 + $0x8] sm:$0xf]
        %v1590 = vld [vmem:[%s4] sm:$0xf]
        %v1591 = vld [vmem:[#allocation3 + $0x4] sm:$0x1]
        %v1592 = vld [vmem:[#allocation3 + $0xc] sm:$0x1]
        %v1594 = vshrl.u32 %v1588, 16
        %v1596 = vrot.slane %v1594, 4
        %v1597 = vshll.u32 %v1588, 16
        %v1599 = vrot.slane %v1597, 5
        %v1600 = vor.u32 %v1596, %v1599
        %v1601 = vrot.slane %v1600, 4
        %v1603 = vshll.u32 %v1591, 16
        %v1605 = vrot.slane %v1603, 5
        %v1606 = vsel %vm524, %v1601, %v1605
        %v1608 = vshrl.u32 %v1589, 16
        %v1610 = vrot.slane %v1608, 4
        %v1611 = vshll.u32 %v1589, 16
        %v1613 = vrot.slane %v1611, 5
        %v1614 = vor.u32 %v1610, %v1613
        %v1615 = vrot.slane %v1614, 4
        %v1617 = vshll.u32 %v1592, 16
        %v1619 = vrot.slane %v1617, 5
        %v1620 = vsel %vm524, %v1615, %v1619
        %s1621 = scalar_lea.vmem %s4, 4
        %v1622 = vld [vmem:[%s1621] sm:$0xf]
        %v1623 = vunpack.c.l.b16 %v1606
        %v1624 = vunpack.c.l.b16 %v1620
        %v1625 = vpack.c.b16 %v1624, %v1623
        %vm1626 = vcmask 64512
        %v1628 = vsel %vm1626, %v1625, 0
        %vm1630 = vcmask 1043456
        %v1632 = vsel %vm1630, %v1622, 0
        %1634 = vmatprep.subr.bf16.mxu0 0
        %1635 = vmatpush1.bf16.msra.mxu0 0
        %1636 = vmatprep.subr.bf16.mxu0 0
        %1637 = vmatpush1.bf16.msra.mxu0 0
        %1638 = vmatprep.subr.bf16.mxu0 0
        %1639 = vmatpush1.bf16.msra.mxu0 0
        %1640 = vmatprep.subr.bf16.mxu0 0
        %1641 = vmatpush1.bf16.msra.mxu0 0
        %1642 = vmatprep.subr.bf16.mxu0 0
        %1643 = vmatpush1.bf16.msra.mxu0 0
        %1644 = vmatprep.subr.bf16.mxu0 0
        %1645 = vmatpush1.bf16.msra.mxu0 0
        %1646 = vmatprep.subr.bf16.mxu0 0
        %1647 = vmatpush1.bf16.msra.mxu0 0
        %1648 = vmatprep.subr.bf16.mxu0 0
        %1649 = vmatpush1.bf16.msra.mxu0 %v1632
        %1650 = vmatprep.subr.bf16.mxu0 0
        %1651 = vmatpush2.bf16.msra.mxu0 0
        %1652 = vmatprep.subr.bf16.mxu0 0
        %1653 = vmatpush2.bf16.msra.mxu0 0
        %1654 = vmatprep.subr.bf16.mxu0 0
        %1655 = vmatpush2.bf16.msra.mxu0 0
        %1656 = vmatprep.subr.bf16.mxu0 0
        %1657 = vmatpush2.bf16.msra.mxu0 0
        %1658 = vmatprep.subr.bf16.mxu0 0
        %1659 = vmatpush2.bf16.msra.mxu0 0
        %1660 = vmatprep.subr.bf16.mxu0 0
        %1661 = vmatpush2.bf16.msra.mxu0 0
        %1662 = vmatprep.subr.bf16.mxu0 0
        %1663 = vmatpush2.bf16.msra.mxu0 0
        %1664 = vmatprep.subr.bf16.mxu0 0
        %1665 = vmatpush2.bf16.msra.mxu0 0
        %1666 = vmatprep.mubr.bf16.mxu0 0
        %1667 = vmatmul.mubr.bf16.gmra.mxu0 %v1628
        %v1668 = vpop.f32.mrf.mxu0
        %v1669 = vadd.f32 0.0, %v1668
        %v1670 = vpop.f32.mrf.mxu0
        %v1671 = vpop.f32.mrf.mxu0
        %v1672 = vadd.f32 0.0, %v1671
        %v1673 = vpop.f32.mrf.mxu0
        %1674 = vdwg.mxu0
        %v1677 = vunpack.c.l.b16 %v1588
        %v1678 = vunpack.c.l.b16 %v1589
        %v1679 = vpack.c.b16 %v1678, %v1677
        %v1681 = vsel %vm1626, %v1679, 0
        %v1684 = vsel %vm1630, %v1590, 0
        %1686 = vmatprep.subr.bf16.mxu0 0
        %1687 = vmatpush1.bf16.msra.mxu0 0
        %1688 = vmatprep.subr.bf16.mxu0 0
        %1689 = vmatpush1.bf16.msra.mxu0 0
        %1690 = vmatprep.subr.bf16.mxu0 0
        %1691 = vmatpush1.bf16.msra.mxu0 0
        %1692 = vmatprep.subr.bf16.mxu0 0
        %1693 = vmatpush1.bf16.msra.mxu0 0
        %1694 = vmatprep.subr.bf16.mxu0 0
        %1695 = vmatpush1.bf16.msra.mxu0 0
        %1696 = vmatprep.subr.bf16.mxu0 0
        %1697 = vmatpush1.bf16.msra.mxu0 0
        %1698 = vmatprep.subr.bf16.mxu0 0
        %1699 = vmatpush1.bf16.msra.mxu0 0
        %1700 = vmatprep.subr.bf16.mxu0 0
        %1701 = vmatpush1.bf16.msra.mxu0 %v1684
        %1702 = vmatprep.subr.bf16.mxu0 0
        %1703 = vmatpush2.bf16.msra.mxu0 0
        %1704 = vmatprep.subr.bf16.mxu0 0
        %1705 = vmatpush2.bf16.msra.mxu0 0
        %1706 = vmatprep.subr.bf16.mxu0 0
        %1707 = vmatpush2.bf16.msra.mxu0 0
        %1708 = vmatprep.subr.bf16.mxu0 0
        %1709 = vmatpush2.bf16.msra.mxu0 0
        %1710 = vmatprep.subr.bf16.mxu0 0
        %1711 = vmatpush2.bf16.msra.mxu0 0
        %1712 = vmatprep.subr.bf16.mxu0 0
        %1713 = vmatpush2.bf16.msra.mxu0 0
        %1714 = vmatprep.subr.bf16.mxu0 0
        %1715 = vmatpush2.bf16.msra.mxu0 0
        %1716 = vmatprep.subr.bf16.mxu0 0
        %1717 = vmatpush2.bf16.msra.mxu0 0
        %1718 = vmatprep.mubr.bf16.mxu0 0
        %1719 = vmatmul.mubr.bf16.gmra.mxu0 %v1681
        %v1720 = vpop.f32.mrf.mxu0
        %v1721 = vadd.f32 %v1669, %v1720
        %v1722 = vpop.f32.mrf.mxu0
        %v1723 = vpop.f32.mrf.mxu0
        %v1724 = vadd.f32 %v1672, %v1723
        %v1725 = vpop.f32.mrf.mxu0
        %1726 = vdwg.mxu0
        %v1727 = vld [vmem:[#allocation3] sm:$0xe]
        %v1728 = vld [vmem:[#allocation3 + $0x8] sm:$0xe]
        %v1733 = vrot.slane %v1727, 5
        %v1734 = vrot.slane %v1733, 4
        %v1735 = vrot.slane %v1591, 5
        %v1736 = vsel %vm731, %v1734, %v1735
        %v1737 = vrot.slane %v1728, 5
        %v1738 = vrot.slane %v1737, 4
        %v1739 = vrot.slane %v1592, 5
        %v1740 = vsel %vm731, %v1738, %v1739
        %s1741 = scalar_lea.vmem %s4, 8
        %v1742 = vld [vmem:[%s1741] sm:$0xf]
        %v1743 = vunpack.c.l.b16 %v1736
        %v1744 = vunpack.c.l.b16 %v1740
        %v1745 = vpack.c.b16 %v1744, %v1743
        %v1747 = vsel %vm1626, %v1745, 0
        %v1750 = vsel %vm1630, %v1742, 0
        %1752 = vmatprep.subr.bf16.mxu0 0
        %1753 = vmatpush1.bf16.msra.mxu0 0
        %1754 = vmatprep.subr.bf16.mxu0 0
        %1755 = vmatpush1.bf16.msra.mxu0 0
        %1756 = vmatprep.subr.bf16.mxu0 0
        %1757 = vmatpush1.bf16.msra.mxu0 0
        %1758 = vmatprep.subr.bf16.mxu0 0
        %1759 = vmatpush1.bf16.msra.mxu0 0
        %1760 = vmatprep.subr.bf16.mxu0 0
        %1761 = vmatpush1.bf16.msra.mxu0 0
        %1762 = vmatprep.subr.bf16.mxu0 0
        %1763 = vmatpush1.bf16.msra.mxu0 0
        %1764 = vmatprep.subr.bf16.mxu0 0
        %1765 = vmatpush1.bf16.msra.mxu0 0
        %1766 = vmatprep.subr.bf16.mxu0 0
        %1767 = vmatpush1.bf16.msra.mxu0 %v1750
        %1768 = vmatprep.subr.bf16.mxu0 0
        %1769 = vmatpush2.bf16.msra.mxu0 0
        %1770 = vmatprep.subr.bf16.mxu0 0
        %1771 = vmatpush2.bf16.msra.mxu0 0
        %1772 = vmatprep.subr.bf16.mxu0 0
        %1773 = vmatpush2.bf16.msra.mxu0 0
        %1774 = vmatprep.subr.bf16.mxu0 0
        %1775 = vmatpush2.bf16.msra.mxu0 0
        %1776 = vmatprep.subr.bf16.mxu0 0
        %1777 = vmatpush2.bf16.msra.mxu0 0
        %1778 = vmatprep.subr.bf16.mxu0 0
        %1779 = vmatpush2.bf16.msra.mxu0 0
        %1780 = vmatprep.subr.bf16.mxu0 0
        %1781 = vmatpush2.bf16.msra.mxu0 0
        %1782 = vmatprep.subr.bf16.mxu0 0
        %1783 = vmatpush2.bf16.msra.mxu0 0
        %1784 = vmatprep.mubr.bf16.mxu0 0
        %1785 = vmatmul.mubr.bf16.gmra.mxu0 %v1747
        %v1786 = vpop.f32.mrf.mxu0
        %v1787 = vadd.f32 0.0, %v1786
        %v1788 = vpop.f32.mrf.mxu0
        %v1789 = vpop.f32.mrf.mxu0
        %v1790 = vadd.f32 0.0, %v1789
        %v1791 = vpop.f32.mrf.mxu0
        %1792 = vdwg.mxu0
        %v1793 = vadd.f32 %v1721, %v1787
        %v1794 = vadd.f32 %v1724, %v1790
        %s1795 = scalar_lea.vmem [#allocation3], 8
        %v1796 = vld [vmem:[%s1795] sm:$0xf]
        %v1797 = vld [vmem:[%s1795 + $0x8] sm:$0xf]
        %s1798 = scalar_lea.vmem %s4, 12
        %v1799 = vld [vmem:[%s1798] sm:$0xf]
        %v1802 = vunpack.c.l.b16 %v1796
        %v1803 = vunpack.c.l.b16 %v1797
        %v1804 = vpack.c.b16 %v1803, %v1802
        %v1806 = vsel %vm1626, %v1804, 0
        %v1809 = vsel %vm1630, %v1799, 0
        %1811 = vmatprep.subr.bf16.mxu0 0
        %1812 = vmatpush1.bf16.msra.mxu0 0
        %1813 = vmatprep.subr.bf16.mxu0 0
        %1814 = vmatpush1.bf16.msra.mxu0 0
        %1815 = vmatprep.subr.bf16.mxu0 0
        %1816 = vmatpush1.bf16.msra.mxu0 0
        %1817 = vmatprep.subr.bf16.mxu0 0
        %1818 = vmatpush1.bf16.msra.mxu0 0
        %1819 = vmatprep.subr.bf16.mxu0 0
        %1820 = vmatpush1.bf16.msra.mxu0 0
        %1821 = vmatprep.subr.bf16.mxu0 0
        %1822 = vmatpush1.bf16.msra.mxu0 0
        %1823 = vmatprep.subr.bf16.mxu0 0
        %1824 = vmatpush1.bf16.msra.mxu0 0
        %1825 = vmatprep.subr.bf16.mxu0 0
        %1826 = vmatpush1.bf16.msra.mxu0 %v1809
        %1827 = vmatprep.subr.bf16.mxu0 0
        %1828 = vmatpush2.bf16.msra.mxu0 0
        %1829 = vmatprep.subr.bf16.mxu0 0
        %1830 = vmatpush2.bf16.msra.mxu0 0
        %1831 = vmatprep.subr.bf16.mxu0 0
        %1832 = vmatpush2.bf16.msra.mxu0 0
        %1833 = vmatprep.subr.bf16.mxu0 0
        %1834 = vmatpush2.bf16.msra.mxu0 0
        %1835 = vmatprep.subr.bf16.mxu0 0
        %1836 = vmatpush2.bf16.msra.mxu0 0
        %1837 = vmatprep.subr.bf16.mxu0 0
        %1838 = vmatpush2.bf16.msra.mxu0 0
        %1839 = vmatprep.subr.bf16.mxu0 0
        %1840 = vmatpush2.bf16.msra.mxu0 0
        %1841 = vmatprep.subr.bf16.mxu0 0
        %1842 = vmatpush2.bf16.msra.mxu0 0
        %1843 = vmatprep.mubr.bf16.mxu0 0
        %1844 = vmatmul.mubr.bf16.gmra.mxu0 %v1806
        %v1845 = vpop.f32.mrf.mxu0
        %v1846 = vadd.f32 0.0, %v1845
        %v1847 = vpop.f32.mrf.mxu0
        %v1848 = vpop.f32.mrf.mxu0
        %v1849 = vadd.f32 0.0, %v1848
        %v1850 = vpop.f32.mrf.mxu0
        %1851 = vdwg.mxu0
        %v1852 = vadd.f32 %v1793, %v1846
        %v1853 = vadd.f32 %v1794, %v1849
        %v1854 = vld [vmem:[%s1795] sm:$0xf]
        %v1855 = vld [vmem:[%s1795 + $0x4] sm:$0x1]
        %v1856 = vld [vmem:[%s1795 + $0x8] sm:$0xf]
        %v1857 = vld [vmem:[%s1795 + $0xc] sm:$0x1]
        %v1859 = vshrl.u32 %v1854, 16
        %v1861 = vrot.slane %v1859, 4
        %v1862 = vshll.u32 %v1854, 16
        %v1864 = vrot.slane %v1862, 5
        %v1865 = vor.u32 %v1861, %v1864
        %v1866 = vrot.slane %v1865, 4
        %v1868 = vshll.u32 %v1855, 16
        %v1870 = vrot.slane %v1868, 5
        %v1871 = vsel %vm524, %v1866, %v1870
        %v1873 = vshrl.u32 %v1856, 16
        %v1875 = vrot.slane %v1873, 4
        %v1876 = vshll.u32 %v1856, 16
        %v1878 = vrot.slane %v1876, 5
        %v1879 = vor.u32 %v1875, %v1878
        %v1880 = vrot.slane %v1879, 4
        %v1882 = vshll.u32 %v1857, 16
        %v1884 = vrot.slane %v1882, 5
        %v1885 = vsel %vm524, %v1880, %v1884
        %s1886 = scalar_lea.vmem %s4, 16
        %v1887 = vld [vmem:[%s1886] sm:$0xf]
        %v1888 = vunpack.c.l.b16 %v1871
        %v1889 = vunpack.c.l.b16 %v1885
        %v1890 = vpack.c.b16 %v1889, %v1888
        %v1892 = vsel %vm1626, %v1890, 0
        %v1895 = vsel %vm1630, %v1887, 0
        %1897 = vmatprep.subr.bf16.mxu0 0
        %1898 = vmatpush1.bf16.msra.mxu0 0
        %1899 = vmatprep.subr.bf16.mxu0 0
        %1900 = vmatpush1.bf16.msra.mxu0 0
        %1901 = vmatprep.subr.bf16.mxu0 0
        %1902 = vmatpush1.bf16.msra.mxu0 0
        %1903 = vmatprep.subr.bf16.mxu0 0
        %1904 = vmatpush1.bf16.msra.mxu0 0
        %1905 = vmatprep.subr.bf16.mxu0 0
        %1906 = vmatpush1.bf16.msra.mxu0 0
        %1907 = vmatprep.subr.bf16.mxu0 0
        %1908 = vmatpush1.bf16.msra.mxu0 0
        %1909 = vmatprep.subr.bf16.mxu0 0
        %1910 = vmatpush1.bf16.msra.mxu0 0
        %1911 = vmatprep.subr.bf16.mxu0 0
        %1912 = vmatpush1.bf16.msra.mxu0 %v1895
        %1913 = vmatprep.subr.bf16.mxu0 0
        %1914 = vmatpush2.bf16.msra.mxu0 0
        %1915 = vmatprep.subr.bf16.mxu0 0
        %1916 = vmatpush2.bf16.msra.mxu0 0
        %1917 = vmatprep.subr.bf16.mxu0 0
        %1918 = vmatpush2.bf16.msra.mxu0 0
        %1919 = vmatprep.subr.bf16.mxu0 0
        %1920 = vmatpush2.bf16.msra.mxu0 0
        %1921 = vmatprep.subr.bf16.mxu0 0
        %1922 = vmatpush2.bf16.msra.mxu0 0
        %1923 = vmatprep.subr.bf16.mxu0 0
        %1924 = vmatpush2.bf16.msra.mxu0 0
        %1925 = vmatprep.subr.bf16.mxu0 0
        %1926 = vmatpush2.bf16.msra.mxu0 0
        %1927 = vmatprep.subr.bf16.mxu0 0
        %1928 = vmatpush2.bf16.msra.mxu0 0
        %1929 = vmatprep.mubr.bf16.mxu0 0
        %1930 = vmatmul.mubr.bf16.gmra.mxu0 %v1892
        %v1931 = vpop.f32.mrf.mxu0
        %v1932 = vadd.f32 0.0, %v1931
        %v1933 = vpop.f32.mrf.mxu0
        %v1934 = vpop.f32.mrf.mxu0
        %v1935 = vadd.f32 0.0, %v1934
        %v1936 = vpop.f32.mrf.mxu0
        %1937 = vdwg.mxu0
        %v1938 = vadd.f32 %v1852, %v1932
        %v1939 = vadd.f32 %v1853, %v1935
        %v1940 = vld [vmem:[%s1795] sm:$0xe]
        %v1941 = vld [vmem:[%s1795 + $0x8] sm:$0xe]
        %v1946 = vrot.slane %v1940, 5
        %v1947 = vrot.slane %v1946, 4
        %v1948 = vrot.slane %v1855, 5
        %v1949 = vsel %vm731, %v1947, %v1948
        %v1950 = vrot.slane %v1941, 5
        %v1951 = vrot.slane %v1950, 4
        %v1952 = vrot.slane %v1857, 5
        %v1953 = vsel %vm731, %v1951, %v1952
        %s1954 = scalar_lea.vmem %s4, 20
        %v1955 = vld [vmem:[%s1954] sm:$0xf]
        %v1956 = vunpack.c.l.b16 %v1949
        %v1957 = vunpack.c.l.b16 %v1953
        %v1958 = vpack.c.b16 %v1957, %v1956
        %v1960 = vsel %vm1626, %v1958, 0
        %v1963 = vsel %vm1630, %v1955, 0
        %1965 = vmatprep.subr.bf16.mxu0 0
        %1966 = vmatpush1.bf16.msra.mxu0 0
        %1967 = vmatprep.subr.bf16.mxu0 0
        %1968 = vmatpush1.bf16.msra.mxu0 0
        %1969 = vmatprep.subr.bf16.mxu0 0
        %1970 = vmatpush1.bf16.msra.mxu0 0
        %1971 = vmatprep.subr.bf16.mxu0 0
        %1972 = vmatpush1.bf16.msra.mxu0 0
        %1973 = vmatprep.subr.bf16.mxu0 0
        %1974 = vmatpush1.bf16.msra.mxu0 0
        %1975 = vmatprep.subr.bf16.mxu0 0
        %1976 = vmatpush1.bf16.msra.mxu0 0
        %1977 = vmatprep.subr.bf16.mxu0 0
        %1978 = vmatpush1.bf16.msra.mxu0 0
        %1979 = vmatprep.subr.bf16.mxu0 0
        %1980 = vmatpush1.bf16.msra.mxu0 %v1963
        %1981 = vmatprep.subr.bf16.mxu0 0
        %1982 = vmatpush2.bf16.msra.mxu0 0
        %1983 = vmatprep.subr.bf16.mxu0 0
        %1984 = vmatpush2.bf16.msra.mxu0 0
        %1985 = vmatprep.subr.bf16.mxu0 0
        %1986 = vmatpush2.bf16.msra.mxu0 0
        %1987 = vmatprep.subr.bf16.mxu0 0
        %1988 = vmatpush2.bf16.msra.mxu0 0
        %1989 = vmatprep.subr.bf16.mxu0 0
        %1990 = vmatpush2.bf16.msra.mxu0 0
        %1991 = vmatprep.subr.bf16.mxu0 0
        %1992 = vmatpush2.bf16.msra.mxu0 0
        %1993 = vmatprep.subr.bf16.mxu0 0
        %1994 = vmatpush2.bf16.msra.mxu0 0
        %1995 = vmatprep.subr.bf16.mxu0 0
        %1996 = vmatpush2.bf16.msra.mxu0 0
        %1997 = vmatprep.mubr.bf16.mxu0 0
        %1998 = vmatmul.mubr.bf16.gmra.mxu0 %v1960
        %v1999 = vpop.f32.mrf.mxu0
        %v2000 = vadd.f32 0.0, %v1999
        %v2001 = vpop.f32.mrf.mxu0
        %v2002 = vpop.f32.mrf.mxu0
        %v2003 = vadd.f32 0.0, %v2002
        %v2004 = vpop.f32.mrf.mxu0
        %2005 = vdwg.mxu0
        %v2006 = vadd.f32 %v1938, %v2000
        %v2007 = vadd.f32 %v1939, %v2003
        %s2008 = scalar_lea.vmem [#allocation3], 16
        %v2009 = vld [vmem:[%s2008] sm:$0xf]
        %v2010 = vld [vmem:[%s2008 + $0x8] sm:$0xf]
        %s2011 = scalar_lea.vmem %s4, 24
        %v2012 = vld [vmem:[%s2011] sm:$0xf]
        %v2015 = vunpack.c.l.b16 %v2009
        %v2016 = vunpack.c.l.b16 %v2010
        %v2017 = vpack.c.b16 %v2016, %v2015
        %v2019 = vsel %vm1626, %v2017, 0
        %v2022 = vsel %vm1630, %v2012, 0
        %2024 = vmatprep.subr.bf16.mxu0 0
        %2025 = vmatpush1.bf16.msra.mxu0 0
        %2026 = vmatprep.subr.bf16.mxu0 0
        %2027 = vmatpush1.bf16.msra.mxu0 0
        %2028 = vmatprep.subr.bf16.mxu0 0
        %2029 = vmatpush1.bf16.msra.mxu0 0
        %2030 = vmatprep.subr.bf16.mxu0 0
        %2031 = vmatpush1.bf16.msra.mxu0 0
        %2032 = vmatprep.subr.bf16.mxu0 0
        %2033 = vmatpush1.bf16.msra.mxu0 0
        %2034 = vmatprep.subr.bf16.mxu0 0
        %2035 = vmatpush1.bf16.msra.mxu0 0
        %2036 = vmatprep.subr.bf16.mxu0 0
        %2037 = vmatpush1.bf16.msra.mxu0 0
        %2038 = vmatprep.subr.bf16.mxu0 0
        %2039 = vmatpush1.bf16.msra.mxu0 %v2022
        %2040 = vmatprep.subr.bf16.mxu0 0
        %2041 = vmatpush2.bf16.msra.mxu0 0
        %2042 = vmatprep.subr.bf16.mxu0 0
        %2043 = vmatpush2.bf16.msra.mxu0 0
        %2044 = vmatprep.subr.bf16.mxu0 0
        %2045 = vmatpush2.bf16.msra.mxu0 0
        %2046 = vmatprep.subr.bf16.mxu0 0
        %2047 = vmatpush2.bf16.msra.mxu0 0
        %2048 = vmatprep.subr.bf16.mxu0 0
        %2049 = vmatpush2.bf16.msra.mxu0 0
        %2050 = vmatprep.subr.bf16.mxu0 0
        %2051 = vmatpush2.bf16.msra.mxu0 0
        %2052 = vmatprep.subr.bf16.mxu0 0
        %2053 = vmatpush2.bf16.msra.mxu0 0
        %2054 = vmatprep.subr.bf16.mxu0 0
        %2055 = vmatpush2.bf16.msra.mxu0 0
        %2056 = vmatprep.mubr.bf16.mxu0 0
        %2057 = vmatmul.mubr.bf16.gmra.mxu0 %v2019
        %v2058 = vpop.f32.mrf.mxu0
        %v2059 = vadd.f32 0.0, %v2058
        %v2060 = vpop.f32.mrf.mxu0
        %v2061 = vpop.f32.mrf.mxu0
        %v2062 = vadd.f32 0.0, %v2061
        %v2063 = vpop.f32.mrf.mxu0
        %2064 = vdwg.mxu0
        %v2065 = vadd.f32 %v2006, %v2059
        %v2066 = vadd.f32 %v2007, %v2062
        %v2067 = vld [vmem:[%s2008] sm:$0xf]
        %v2068 = vld [vmem:[%s2008 + $0x4] sm:$0x1]
        %v2069 = vld [vmem:[%s2008 + $0x8] sm:$0xf]
        %v2070 = vld [vmem:[%s2008 + $0xc] sm:$0x1]
        %v2072 = vshrl.u32 %v2067, 16
        %v2074 = vrot.slane %v2072, 4
        %v2075 = vshll.u32 %v2067, 16
        %v2077 = vrot.slane %v2075, 5
        %v2078 = vor.u32 %v2074, %v2077
        %v2079 = vrot.slane %v2078, 4
        %v2081 = vshll.u32 %v2068, 16
        %v2083 = vrot.slane %v2081, 5
        %v2084 = vsel %vm524, %v2079, %v2083
        %v2086 = vshrl.u32 %v2069, 16
        %v2088 = vrot.slane %v2086, 4
        %v2089 = vshll.u32 %v2069, 16
        %v2091 = vrot.slane %v2089, 5
        %v2092 = vor.u32 %v2088, %v2091
        %v2093 = vrot.slane %v2092, 4
        %v2095 = vshll.u32 %v2070, 16
        %v2097 = vrot.slane %v2095, 5
        %v2098 = vsel %vm524, %v2093, %v2097
        %s2099 = scalar_lea.vmem %s4, 28
        %v2100 = vld [vmem:[%s2099] sm:$0xf]
        %v2101 = vunpack.c.l.b16 %v2084
        %v2102 = vunpack.c.l.b16 %v2098
        %v2103 = vpack.c.b16 %v2102, %v2101
        %v2105 = vsel %vm1626, %v2103, 0
        %v2108 = vsel %vm1630, %v2100, 0
        %2110 = vmatprep.subr.bf16.mxu0 0
        %2111 = vmatpush1.bf16.msra.mxu0 0
        %2112 = vmatprep.subr.bf16.mxu0 0
        %2113 = vmatpush1.bf16.msra.mxu0 0
        %2114 = vmatprep.subr.bf16.mxu0 0
        %2115 = vmatpush1.bf16.msra.mxu0 0
        %2116 = vmatprep.subr.bf16.mxu0 0
        %2117 = vmatpush1.bf16.msra.mxu0 0
        %2118 = vmatprep.subr.bf16.mxu0 0
        %2119 = vmatpush1.bf16.msra.mxu0 0
        %2120 = vmatprep.subr.bf16.mxu0 0
        %2121 = vmatpush1.bf16.msra.mxu0 0
        %2122 = vmatprep.subr.bf16.mxu0 0
        %2123 = vmatpush1.bf16.msra.mxu0 0
        %2124 = vmatprep.subr.bf16.mxu0 0
        %2125 = vmatpush1.bf16.msra.mxu0 %v2108
        %2126 = vmatprep.subr.bf16.mxu0 0
        %2127 = vmatpush2.bf16.msra.mxu0 0
        %2128 = vmatprep.subr.bf16.mxu0 0
        %2129 = vmatpush2.bf16.msra.mxu0 0
        %2130 = vmatprep.subr.bf16.mxu0 0
        %2131 = vmatpush2.bf16.msra.mxu0 0
        %2132 = vmatprep.subr.bf16.mxu0 0
        %2133 = vmatpush2.bf16.msra.mxu0 0
        %2134 = vmatprep.subr.bf16.mxu0 0
        %2135 = vmatpush2.bf16.msra.mxu0 0
        %2136 = vmatprep.subr.bf16.mxu0 0
        %2137 = vmatpush2.bf16.msra.mxu0 0
        %2138 = vmatprep.subr.bf16.mxu0 0
        %2139 = vmatpush2.bf16.msra.mxu0 0
        %2140 = vmatprep.subr.bf16.mxu0 0
        %2141 = vmatpush2.bf16.msra.mxu0 0
        %2142 = vmatprep.mubr.bf16.mxu0 0
        %2143 = vmatmul.mubr.bf16.gmra.mxu0 %v2105
        %v2144 = vpop.f32.mrf.mxu0
        %v2145 = vadd.f32 0.0, %v2144
        %v2146 = vpop.f32.mrf.mxu0
        %v2147 = vpop.f32.mrf.mxu0
        %v2148 = vadd.f32 0.0, %v2147
        %v2149 = vpop.f32.mrf.mxu0
        %2150 = vdwg.mxu0
        %v2151 = vadd.f32 %v2065, %v2145
        %v2152 = vadd.f32 %v2066, %v2148
        %v2153 = vld [vmem:[%s2008] sm:$0xe]
        %v2154 = vld [vmem:[%s2008 + $0x8] sm:$0xe]
        %v2159 = vrot.slane %v2153, 5
        %v2160 = vrot.slane %v2159, 4
        %v2161 = vrot.slane %v2068, 5
        %v2162 = vsel %vm731, %v2160, %v2161
        %v2163 = vrot.slane %v2154, 5
        %v2164 = vrot.slane %v2163, 4
        %v2165 = vrot.slane %v2070, 5
        %v2166 = vsel %vm731, %v2164, %v2165
        %s2167 = scalar_lea.vmem %s4, 32
        %v2168 = vld [vmem:[%s2167] sm:$0xf]
        %v2169 = vunpack.c.l.b16 %v2162
        %v2170 = vunpack.c.l.b16 %v2166
        %v2171 = vpack.c.b16 %v2170, %v2169
        %v2173 = vsel %vm1626, %v2171, 0
        %v2176 = vsel %vm1630, %v2168, 0
        %2178 = vmatprep.subr.bf16.mxu0 0
        %2179 = vmatpush1.bf16.msra.mxu0 0
        %2180 = vmatprep.subr.bf16.mxu0 0
        %2181 = vmatpush1.bf16.msra.mxu0 0
        %2182 = vmatprep.subr.bf16.mxu0 0
        %2183 = vmatpush1.bf16.msra.mxu0 0
        %2184 = vmatprep.subr.bf16.mxu0 0
        %2185 = vmatpush1.bf16.msra.mxu0 0
        %2186 = vmatprep.subr.bf16.mxu0 0
        %2187 = vmatpush1.bf16.msra.mxu0 0
        %2188 = vmatprep.subr.bf16.mxu0 0
        %2189 = vmatpush1.bf16.msra.mxu0 0
        %2190 = vmatprep.subr.bf16.mxu0 0
        %2191 = vmatpush1.bf16.msra.mxu0 0
        %2192 = vmatprep.subr.bf16.mxu0 0
        %2193 = vmatpush1.bf16.msra.mxu0 %v2176
        %2194 = vmatprep.subr.bf16.mxu0 0
        %2195 = vmatpush2.bf16.msra.mxu0 0
        %2196 = vmatprep.subr.bf16.mxu0 0
        %2197 = vmatpush2.bf16.msra.mxu0 0
        %2198 = vmatprep.subr.bf16.mxu0 0
        %2199 = vmatpush2.bf16.msra.mxu0 0
        %2200 = vmatprep.subr.bf16.mxu0 0
        %2201 = vmatpush2.bf16.msra.mxu0 0
        %2202 = vmatprep.subr.bf16.mxu0 0
        %2203 = vmatpush2.bf16.msra.mxu0 0
        %2204 = vmatprep.subr.bf16.mxu0 0
        %2205 = vmatpush2.bf16.msra.mxu0 0
        %2206 = vmatprep.subr.bf16.mxu0 0
        %2207 = vmatpush2.bf16.msra.mxu0 0
        %2208 = vmatprep.subr.bf16.mxu0 0
        %2209 = vmatpush2.bf16.msra.mxu0 0
        %2210 = vmatprep.mubr.bf16.mxu0 0
        %2211 = vmatmul.mubr.bf16.gmra.mxu0 %v2173
        %v2212 = vpop.f32.mrf.mxu0
        %v2213 = vadd.f32 0.0, %v2212
        %v2214 = vpop.f32.mrf.mxu0
        %v2215 = vpop.f32.mrf.mxu0
        %v2216 = vadd.f32 0.0, %v2215
        %v2217 = vpop.f32.mrf.mxu0
        %2218 = vdwg.mxu0
        %v2219 = vadd.f32 %v2151, %v2213
        %v2220 = vadd.f32 %v2152, %v2216
        %v2221 = vld [vmem:[%s5] sm:$0x1]
        %v2223 = vlaneseq
        %v2224 = vshrl.u32 %v2223, 7
        %v2225 = vsub.s32 0, %v2224
        %v2226 = vrot.slane %v2221, %v2225
        %v2228 = vmul.f32 %v2219, %v2226
        %v2229 = vmul.f32 %v2220, %v2226
        %v2230 = vld [vmem:[%s6] sm:$0x1]
        %v2232 = vlaneseq
        %v2233 = vshrl.u32 %v2232, 7
        %v2234 = vsub.s32 0, %v2233
        %v2235 = vrot.slane %v2230, %v2234
        %v2237 = vadd.f32 %v2228, %v2235
        %v2238 = vadd.f32 %v2229, %v2235
        %v2239 = vmax.f32 %v2237, 0.0
        %v2240 = vmax.f32 %v2238, 0.0
        %2241 = vst.msk [vmem:[%s285] sm:$0xff] %vm1626, %v2239
        %2242 = vst.msk [vmem:[%s285 + $0x8] sm:$0xff] %vm1626, %v2240
        %s2243 = sand.u32 %s195, 1
        %s2244 = scalar_lea.sflag [#allocation5], %s2243
        %s2245 = sand.u32 %s195, 1
        %s2246 = smul.addr %s2245, 16
        %s2247 = scalar_lea.vmem [#allocation4], %s2246
        // Predicated region
        $region57: #{tpu_custom_call.1} parent=47 // pred_check
          %p2248 = pneg %p205
        $region58: #{tpu_custom_call.1} parent=47 // pred_check_branch
          %2250 = sbr.rel (%p2248) target = $region60
        $region59: #{tpu_custom_call.1} parent=47 // pred_region
          %s2251 = smul.u32 2, %s26
          %s2253 = ssub.s32 256, 256
          %2254 = vsyncadd %s2244, %s2253
          %s2255 = smul.addr %s25, 8
          %s2256 = sadd.s32 %s2251, %s2255
          %s2257 = smul.addr %s2256, 128
          %s2258 = scalar_lea.hbm %s7, %s2257
          %s2259 = sshll.u32 %s2247, 4
          %s2260 = int_to_ptr.vmem [resolvable:$true] %s2259
          %2265 = dma.vmem_to_hbm [thread:$0]  %s2260, 256, %s2258, %s2244, 128, 128, 8
        $region60: #{tpu_custom_call.1} parent=47 // pred_fallthru
          _
      $region48: #{tpu_custom_call.1} parent=5 // pred_fallthru
        _
      %p2266 = scmp.le.s32.totalorder 2, %s16
      // Predicated region
      $region61: #{tpu_custom_call.1} parent=5 // pred_check
        %p2267 = pneg %p2266
      $region62: #{tpu_custom_call.1} parent=5 // pred_check_branch
        %2269 = sbr.rel (%p2267) target = $region64
      $region63: #{tpu_custom_call.1} parent=5 // pred_region
        %s2270 = ssub.s32 %s16, 2
        // Predicated region
        $region65: #{tpu_custom_call.1} parent=63 // pred_check
          %p2271 = pneg %p211
        $region66: #{tpu_custom_call.1} parent=63 // pred_check_branch
          %2273 = sbr.rel (%p2271) target = $region68
        $region67: #{tpu_custom_call.1} parent=63 // pred_region
          %s2274 = sand.u32 %s196, 1
          %s2275 = scalar_lea.sflag [#allocation5], %s2274
          %s2276 = sand.u32 %s196, 1
          %s2277 = smul.addr %s2276, 16
          %s2278 = scalar_lea.vmem [#allocation4], %s2277
          %2279 = dma.done %s2275, 256
        $region68: #{tpu_custom_call.1} parent=63 // pred_fallthru
          _
      $region64: #{tpu_custom_call.1} parent=5 // pred_fallthru
        _
    $region6: #{tpu_custom_call.1} parent=1 // loop_footer
      %s20 = sadd.s32 1, %s16
    $region7: #{tpu_custom_call.1} parent=1 // loop_footer_branch
      %15 = sbr.rel target = $region3
    $region8: #{tpu_custom_call.1} parent=1 // loop_exit
      _
    %2280 = vsyncpa [#allocation5], 1
    %s2281 = scalar_lea.sflag [#allocation5], 1
    %2282 = vsyncpa %s2281, 1

</llo_original>
